<compile_context>
chip_gen: v7x
topology: tpu7x:2x2x1
jax: 0.10.0
libtpu: 0.0.40
codegen_flags: <defaults>
</compile_context>

<pallas_src>
import functools
import math

import jax
import jax.numpy as jnp
from jax.experimental import pallas as pl
from jax.experimental.pallas import tpu as pltpu


# ----------------------------------------------------------------------------
# Config (mirrors the fields of `args` used by the module)
# ----------------------------------------------------------------------------
class Args:
    obs_length = 8
    pred_length = 4
    seq_length = 12          # obs_length + pred_length
    emsize = 32
    latant_dim = 16
    goals = 4
    dec_with_z = True
    best_of_many = True


_VMEM = pltpu.MemorySpace.VMEM
_LANES = 128


# ----------------------------------------------------------------------------
# Single fused Pallas kernel (grid=(), everything resident in VMEM)
# ----------------------------------------------------------------------------
def _fused_kernel(const_ref, nodes_ref, eps_ref, out_ref, *,
                  layout, n_pad, t_obs, t_pred, t_seq, e, l, goals):
    f32 = jnp.float32
    to2, tp2 = 2 * t_obs, 2 * t_pred
    kn = goals * n_pad
    scale = 1.0 / math.sqrt(e)

    def cget(name):
        r0, nr, nc = layout[name]
        return const_ref[r0:r0 + nr, 0:nc]          # static window load

    nodes = nodes_ref[...]                           # (Np, 2T)  xy-interleaved

    # ---- TS embedding: per-timestep VPU broadcast FMA (no K=2 MXU op) ------
    w_emb = cget("ts_emb_w")                         # (2, E)
    b_emb = cget("ts_emb_b")                         # (1, E)
    w0, w1 = w_emb[0:1, :], w_emb[1:2, :]
    emb_steps = []
    for t in range(t_obs):                           # static To
        xt = nodes[:, 2 * t:2 * t + 1]               # (Np, 1)
        yt = nodes[:, 2 * t + 1:2 * t + 2]           # (Np, 1)
        emb_steps.append(jnp.maximum(xt * w0 + yt * w1 + b_emb, 0.0))
    emb2d = jnp.concatenate(emb_steps, axis=0)       # (To*Np, E), row = t*Np+n

    # ---- block-diagonal temporal self-attention (one wide score tile) ------
    scores = jax.lax.dot_general(emb2d, emb2d, (((1,), (1,)), ((), ())),
                                 preferred_element_type=f32) * scale
    scores = scores + cget("attn_mask")              # -1e9 on cross-node pairs
    scores = scores - jnp.max(scores, axis=-1, keepdims=True)
    pexp = jnp.exp(scores)
    probs = pexp * pl.reciprocal(jnp.sum(pexp, axis=-1, keepdims=True),
                                 approx=True)
    attn2d = jnp.dot(probs, emb2d, preferred_element_type=f32)    # (To*Np, E)
    pooled = jnp.mean(attn2d.reshape(t_obs, n_pad, e), axis=0)    # (Np, E)
    output_ts = (jnp.dot(pooled, cget("ts_out_w"), preferred_element_type=f32)
                 + cget("ts_out_b"))                               # (Np, E)

    # ---- CVAE encoder (fused output_ts projection, fused mu/logvar) --------
    y_emb = jnp.maximum(
        jnp.dot(nodes, cget("cave_y_w"), preferred_element_type=f32)
        + cget("cave_y_b"), 0.0)                                   # (Np, E)
    ts_proj = jnp.dot(output_ts, cget("ts_fused_w"),
                      preferred_element_type=f32)                  # (Np, 3E)
    h = jnp.maximum(
        ts_proj[:, :e]
        + jnp.dot(y_emb, cget("cave_h_wy"), preferred_element_type=f32)
        + cget("cave_h_b"), 0.0)                                   # (Np, E)
    ml = (jnp.dot(h, cget("cave_ml_w"), preferred_element_type=f32)
          + cget("cave_ml_b"))                                     # (Np, 2L)
    mu, logvar = ml[:, :l], ml[:, l:]
    sigma = jnp.exp(0.5 * logvar)
    kld_pn = -0.5 * jnp.sum(1.0 + logvar - mu * mu - sigma * sigma,
                            axis=-1, keepdims=True)                # (Np, 1)

    # ---- reparameterized Z, K-major rows (row = k*Np + n) ------------------
    mu_rep = jnp.broadcast_to(mu[None], (goals, n_pad, l)).reshape(kn, l)
    sg_rep = jnp.broadcast_to(sigma[None], (goals, n_pad, l)).reshape(kn, l)
    z = mu_rep + sg_rep * eps_ref[...]                             # (K*Np, L)

    # ---- decoder (fused z projection, K=2 goal contraction on the VPU) -----
    z_proj = jnp.dot(z, cget("z_fused_w"), preferred_element_type=f32)  # (K*Np, 2E)

    ts_h1 = jnp.broadcast_to(ts_proj[:, e:2 * e][None],
                             (goals, n_pad, e)).reshape(kn, e)
    h1 = jnp.maximum(ts_h1 + z_proj[:, :e] + cget("dec_h1_b"), 0.0)
    pred_goal = (jnp.dot(h1, cget("dec_goal_w"), preferred_element_type=f32)
                 + cget("dec_goal_b"))                             # (K*Np, 2)

    w_g = cget("dec_h2_wg")                                        # (2, E)
    goal_h2 = (pred_goal[:, 0:1] * w_g[0:1, :]
               + pred_goal[:, 1:2] * w_g[1:2, :])                  # VPU FMA
    ts_h2 = jnp.broadcast_to(ts_proj[:, 2 * e:][None],
                             (goals, n_pad, e)).reshape(kn, e)
    h2 = jnp.maximum(ts_h2 + z_proj[:, e:] + goal_h2 + cget("dec_h2_b"), 0.0)
    pred_traj = (jnp.dot(h2, cget("dec_traj_w"), preferred_element_type=f32)
                 + cget("dec_traj_b"))                             # (K*Np, Tp*2)

    # ---- best-of-many CVAE loss, reduced to scalars in-kernel --------------
    tar_y = nodes[:, to2:]                                         # (Np, Tp*2)
    goal_xy = tar_y[:, tp2 - 2:]                                   # (Np, 2)
    ge_cols, te_cols = [], []
    for kk in range(goals):                                        # static K
        dg = pred_goal[kk * n_pad:(kk + 1) * n_pad, :] - goal_xy
        dt = pred_traj[kk * n_pad:(kk + 1) * n_pad, :] - tar_y
        ge_cols.append(jnp.sum(dg * dg, axis=-1, keepdims=True))
        te_cols.append(jnp.sum(dt * dt, axis=-1, keepdims=True))
    ge = jnp.concatenate(ge_cols, axis=-1)                         # (Np, K)
    te = jnp.concatenate(te_cols, axis=-1)                         # (Np, K)

    # best-of-many: k minimizing the goal error (first on ties)
    kmin = jnp.min(ge, axis=-1, keepdims=True)
    kidx = jax.lax.broadcasted_iota(jnp.int32, ge.shape, 1)
    best = jnp.min(jnp.where(ge == kmin, kidx, jnp.iinfo(jnp.int32).max),
                   axis=-1, keepdims=True)
    onehot = (kidx == best).astype(f32)
    lg_pn = jnp.sum(ge * onehot, axis=-1, keepdims=True)           # (Np, 1)
    lt_pn = jnp.sum(te * onehot, axis=-1, keepdims=True)           # (Np, 1)

    # masked mean over valid nodes (node_mask holds 1/n_valid on valid rows)
    nmask = cget("node_mask")                                      # (Np, 1)
    losses = jnp.sum(
        jnp.concatenate([lg_pn, lt_pn, kld_pn], axis=-1) * nmask,
        axis=0, keepdims=True)                                     # (1, 3)

    # lane-dense output slab, direct sub-window stores (no in-kernel concat)
    out_ref[0:kn, 0:2] = pred_goal
    out_ref[0:kn, 2:2 + tp2] = pred_traj
    out_ref[kn:kn + 1, 0:3] = losses


# ----------------------------------------------------------------------------
# Deterministic parameter initialization (biases stored as (1, n))
# ----------------------------------------------------------------------------
def _init_linear(key, fan_in, fan_out):
    kw, kb = jax.random.split(key)
    bound = 1.0 / math.sqrt(fan_in)
    w = jax.random.uniform(kw, (fan_in, fan_out), jnp.float32, -bound, bound)
    b = jax.random.uniform(kb, (1, fan_out), jnp.float32, -bound, bound)
    return w, b


def init_params(key, args):
    e, l, t, pr = args.emsize, args.latant_dim, args.seq_length, args.pred_length
    keys = jax.random.split(key, 10)
    P = {}
    # TS_transformer surrogate
    P["ts_emb_w"], P["ts_emb_b"] = _init_linear(keys[0], 2, e)
    P["ts_out_w"], P["ts_out_b"] = _init_linear(keys[1], e, e)
    # CAVE encoder (concat weight split into row blocks; mu/logvar merged)
    P["cave_y_w"], P["cave_y_b"] = _init_linear(keys[2], t * 2, e)
    w, b = _init_linear(keys[3], 2 * e, e)
    P["cave_h_wts"], P["cave_h_wy"], P["cave_h_b"] = w[:e], w[e:], b
    wm, bm = _init_linear(keys[4], e, l)
    wl, bl = _init_linear(keys[5], e, l)
    P["cave_ml_w"] = jnp.concatenate([wm, wl], axis=1)
    P["cave_ml_b"] = jnp.concatenate([bm, bl], axis=1)
    # Decoder (concat weights split into row blocks)
    w, b = _init_linear(keys[6], e + l, e)
    P["dec_h1_wts"], P["dec_h1_wz"], P["dec_h1_b"] = w[:e], w[e:], b
    P["dec_goal_w"], P["dec_goal_b"] = _init_linear(keys[7], e, 2)
    w, b = _init_linear(keys[8], e + l + 2, e)
    P["dec_h2_wts"], P["dec_h2_wz"], P["dec_h2_wg"] = w[:e], w[e:e + l], w[e + l:]
    P["dec_h2_b"] = b
    P["dec_traj_w"], P["dec_traj_b"] = _init_linear(keys[9], e, pr * 2)
    return P


# ----------------------------------------------------------------------------
# One-time packing: all params + constant masks -> one (R, 128) VMEM slab
# ----------------------------------------------------------------------------
def pack_constants(params, args, n_valid, n_pad):
    t_obs = args.obs_length

    ts_fused_w = jnp.concatenate(
        [params["cave_h_wts"], params["dec_h1_wts"], params["dec_h2_wts"]], axis=1)
    z_fused_w = jnp.concatenate([params["dec_h1_wz"], params["dec_h2_wz"]], axis=1)

    # additive attention mask: rows ordered (t, n) -> same node iff i%Np == j%Np
    m = n_pad * t_obs
    nid = jnp.arange(m) % n_pad
    attn_mask = jnp.where(nid[:, None] == nid[None, :], 0.0, -1e9).astype(jnp.float32)
    # per-node mean mask (1/n_valid on valid rows, 0 on padded rows)
    node_mask = jnp.where(jnp.arange(n_pad) < n_valid,
                          1.0 / n_valid, 0.0)[:, None].astype(jnp.float32)

    items = [
        ("ts_emb_w", params["ts_emb_w"]), ("ts_out_w", params["ts_out_w"]),
        ("cave_y_w", params["cave_y_w"]), ("ts_fused_w", ts_fused_w),
        ("cave_h_wy", params["cave_h_wy"]), ("cave_ml_w", params["cave_ml_w"]),
        ("z_fused_w", z_fused_w), ("dec_goal_w", params["dec_goal_w"]),
        ("dec_h2_wg", params["dec_h2_wg"]), ("dec_traj_w", params["dec_traj_w"]),
        ("ts_emb_b", params["ts_emb_b"]), ("ts_out_b", params["ts_out_b"]),
        ("cave_y_b", params["cave_y_b"]), ("cave_h_b", params["cave_h_b"]),
        ("cave_ml_b", params["cave_ml_b"]), ("dec_h1_b", params["dec_h1_b"]),
        ("dec_goal_b", params["dec_goal_b"]), ("dec_h2_b", params["dec_h2_b"]),
        ("dec_traj_b", params["dec_traj_b"]),
        ("attn_mask", attn_mask), ("node_mask", node_mask),
    ]

    layout, blocks, row = {}, [], 0
    for name, arr in items:
        arr = jnp.asarray(arr, jnp.float32)
        r, c = arr.shape
        assert c <= _LANES, f"{name} too wide for 128-lane const slab"
        layout[name] = (row, r, c)
        rpad = ((r + 7) // 8) * 8                    # 8-sublane aligned blocks
        blocks.append(jnp.zeros((rpad, _LANES), jnp.float32).at[:r, :c].set(arr))
        row += rpad
    slab = jnp.concatenate(blocks, axis=0)           # one-time, outside jit
    return slab, layout


# ----------------------------------------------------------------------------
# VVtraPD forward (training path, iftest=False)
# ----------------------------------------------------------------------------
def vvtrapd_forward(const_slab, nodes_abs, eps, *, layout, args):
    t_obs, t_pred, t_seq = args.obs_length, args.pred_length, args.seq_length
    e, l, k = args.emsize, args.latant_dim, args.goals
    n = nodes_abs.shape[1]
    n_pad = ((n + 7) // 8) * 8
    kn = k * n_pad
    tp2 = 2 * t_pred

    # minimal wrapper prep: one padded (Np, 2T) node tensor + padded K-major eps
    nodes_p = jnp.pad(
        jnp.transpose(nodes_abs, (1, 0, 2)).reshape(n, t_seq * 2),
        ((0, n_pad - n), (0, 0)))
    eps_p = jnp.pad(eps, ((0, 0), (0, n_pad - n), (0, 0))).reshape(kn, l)

    kernel = functools.partial(
        _fused_kernel, layout=layout, n_pad=n_pad,
        t_obs=t_obs, t_pred=t_pred, t_seq=t_seq, e=e, l=l, goals=k)

    m_att = n_pad * t_obs
    flops = 2 * (2 * m_att * m_att * e
                 + n_pad * e * (2 * t_seq + 3 * e + 2 * e + 2 * l)
                 + kn * (2 * e * l + 2 * e + e * tp2))
    cost = pl.CostEstimate(
        flops=int(flops),
        transcendentals=int(m_att * m_att + m_att + n_pad * l),
        bytes_accessed=int(4 * (const_slab.size + nodes_p.size + eps_p.size
                                + (kn + 8) * _LANES)))

    out_slab = pl.pallas_call(
        kernel,
        out_shape=jax.ShapeDtypeStruct((kn + 8, _LANES), jnp.float32),
        in_specs=[pl.BlockSpec(memory_space=_VMEM)] * 3,
        out_specs=pl.BlockSpec(memory_space=_VMEM),
        cost_estimate=cost,
    )(const_slab, nodes_p, eps_p)

    pred = out_slab[:kn, :2 + tp2].reshape(k, n_pad, 2 + tp2)
    pred = jnp.transpose(pred, (1, 0, 2))[:n]                      # (N, K, 2+Tp*2)
    pred_goal = pred[..., :2]                                      # (N, K, 2)
    pred_traj = pred[..., 2:].reshape(n, k, t_pred, 2)             # (N, K, Tp, 2)
    loss_dict = {"loss_goal": out_slab[kn, 0],
                 "loss_traj": out_slab[kn, 1],
                 "loss_kld": out_slab[kn, 2]}
    return pred_goal, pred_traj, loss_dict


# ----------------------------------------------------------------------------
# Driver
# ----------------------------------------------------------------------------
if __name__ == "__main__":
    args = Args()
    n_peds = 6
    n_pad = ((n_peds + 7) // 8) * 8

    key = jax.random.PRNGKey(0)
    k_param, k_traj, k_eps = jax.random.split(key, 3)

    params = init_params(k_param, args)
    const_slab, layout = pack_constants(params, args, n_valid=n_peds, n_pad=n_pad)

    nodes_abs = jax.random.normal(
        k_traj, (args.seq_length, n_peds, 2), jnp.float32)          # (T, N, 2)
    eps = jax.random.normal(
        k_eps, (args.goals, n_peds, args.latant_dim), jnp.float32)  # reparam noise

    fwd = jax.jit(functools.partial(vvtrapd_forward, layout=layout, args=args))
    pred_goal, pred_traj, loss_dict = fwd(const_slab, nodes_abs, eps)
    jax.block_until_ready((pred_goal, pred_traj, loss_dict))

    assert pred_goal.shape == (n_peds, args.goals, 2)
    assert pred_traj.shape == (n_peds, args.goals, args.pred_length, 2)
    assert all(bool(jnp.isfinite(v)) for v in loss_dict.values())
    print("KERNEL_OK")
</pallas_src>

<mosaic_0001>
module attributes {stable_mosaic.version = 11 : i64} {
  func.func @_fused_kernel(%arg0: memref<392x128xf32, #tpu.memory_space<vmem>>, %arg1: memref<8x24xf32, #tpu.memory_space<vmem>>, %arg2: memref<32x16xf32, #tpu.memory_space<vmem>>, %arg3: memref<40x128xf32, #tpu.memory_space<vmem>>) attributes {dimension_semantics = [], scalar_prefetch = 0 : i64, scratch_operands = 0 : i64, tpu.core_type = #tpu.core_type<tc>} {
    %c0 = arith.constant 0 : index
    %c0_0 = arith.constant 0 : index
    %0 = vector.load %arg1[%c0, %c0_0] : memref<8x24xf32, #tpu.memory_space<vmem>>, vector<8x24xf32>
    %c0_1 = arith.constant 0 : index
    %c0_2 = arith.constant 0 : index
    %1 = vector.load %arg0[%c0_1, %c0_2] : memref<392x128xf32, #tpu.memory_space<vmem>>, vector<2x32xf32>
    %c248 = arith.constant 248 : index
    %c0_3 = arith.constant 0 : index
    %2 = vector.load %arg0[%c248, %c0_3] : memref<392x128xf32, #tpu.memory_space<vmem>>, vector<1x32xf32>
    %3 = vector.extract_strided_slice %1 {offsets = [0, 0], sizes = [1, 32], strides = [1, 1]} : vector<2x32xf32> to vector<1x32xf32>
    %4 = vector.extract_strided_slice %1 {offsets = [1, 0], sizes = [1, 32], strides = [1, 1]} : vector<2x32xf32> to vector<1x32xf32>
    %5 = vector.extract_strided_slice %0 {offsets = [0, 0], sizes = [8, 1], strides = [1, 1]} : vector<8x24xf32> to vector<8x1xf32>
    %6 = vector.extract_strided_slice %0 {offsets = [0, 1], sizes = [8, 1], strides = [1, 1]} : vector<8x24xf32> to vector<8x1xf32>
    %7 = vector.broadcast %5 : vector<8x1xf32> to vector<8x32xf32>
    %8 = vector.broadcast %3 : vector<1x32xf32> to vector<8x32xf32>
    %9 = arith.mulf %7, %8 : vector<8x32xf32>
    %10 = vector.broadcast %6 : vector<8x1xf32> to vector<8x32xf32>
    %11 = vector.broadcast %4 : vector<1x32xf32> to vector<8x32xf32>
    %12 = arith.mulf %10, %11 : vector<8x32xf32>
    %13 = arith.addf %9, %12 : vector<8x32xf32>
    %14 = vector.broadcast %2 : vector<1x32xf32> to vector<8x32xf32>
    %15 = arith.addf %13, %14 : vector<8x32xf32>
    %cst = arith.constant 0.000000e+00 : f32
    %16 = vector.broadcast %cst : f32 to vector<8x32xf32>
    %17 = arith.maximumf %15, %16 : vector<8x32xf32>
    %18 = vector.extract_strided_slice %0 {offsets = [0, 2], sizes = [8, 1], strides = [1, 1]} : vector<8x24xf32> to vector<8x1xf32>
    %19 = vector.extract_strided_slice %0 {offsets = [0, 3], sizes = [8, 1], strides = [1, 1]} : vector<8x24xf32> to vector<8x1xf32>
    %20 = vector.broadcast %18 : vector<8x1xf32> to vector<8x32xf32>
    %21 = vector.broadcast %3 : vector<1x32xf32> to vector<8x32xf32>
    %22 = arith.mulf %20, %21 : vector<8x32xf32>
    %23 = vector.broadcast %19 : vector<8x1xf32> to vector<8x32xf32>
    %24 = vector.broadcast %4 : vector<1x32xf32> to vector<8x32xf32>
    %25 = arith.mulf %23, %24 : vector<8x32xf32>
    %26 = arith.addf %22, %25 : vector<8x32xf32>
    %27 = vector.broadcast %2 : vector<1x32xf32> to vector<8x32xf32>
    %28 = arith.addf %26, %27 : vector<8x32xf32>
    %cst_4 = arith.constant 0.000000e+00 : f32
    %29 = vector.broadcast %cst_4 : f32 to vector<8x32xf32>
    %30 = arith.maximumf %28, %29 : vector<8x32xf32>
    %31 = vector.extract_strided_slice %0 {offsets = [0, 4], sizes = [8, 1], strides = [1, 1]} : vector<8x24xf32> to vector<8x1xf32>
    %32 = vector.extract_strided_slice %0 {offsets = [0, 5], sizes = [8, 1], strides = [1, 1]} : vector<8x24xf32> to vector<8x1xf32>
    %33 = vector.broadcast %31 : vector<8x1xf32> to vector<8x32xf32>
    %34 = vector.broadcast %3 : vector<1x32xf32> to vector<8x32xf32>
    %35 = arith.mulf %33, %34 : vector<8x32xf32>
    %36 = vector.broadcast %32 : vector<8x1xf32> to vector<8x32xf32>
    %37 = vector.broadcast %4 : vector<1x32xf32> to vector<8x32xf32>
    %38 = arith.mulf %36, %37 : vector<8x32xf32>
    %39 = arith.addf %35, %38 : vector<8x32xf32>
    %40 = vector.broadcast %2 : vector<1x32xf32> to vector<8x32xf32>
    %41 = arith.addf %39, %40 : vector<8x32xf32>
    %cst_5 = arith.constant 0.000000e+00 : f32
    %42 = vector.broadcast %cst_5 : f32 to vector<8x32xf32>
    %43 = arith.maximumf %41, %42 : vector<8x32xf32>
    %44 = vector.extract_strided_slice %0 {offsets = [0, 6], sizes = [8, 1], strides = [1, 1]} : vector<8x24xf32> to vector<8x1xf32>
    %45 = vector.extract_strided_slice %0 {offsets = [0, 7], sizes = [8, 1], strides = [1, 1]} : vector<8x24xf32> to vector<8x1xf32>
    %46 = vector.broadcast %44 : vector<8x1xf32> to vector<8x32xf32>
    %47 = vector.broadcast %3 : vector<1x32xf32> to vector<8x32xf32>
    %48 = arith.mulf %46, %47 : vector<8x32xf32>
    %49 = vector.broadcast %45 : vector<8x1xf32> to vector<8x32xf32>
    %50 = vector.broadcast %4 : vector<1x32xf32> to vector<8x32xf32>
    %51 = arith.mulf %49, %50 : vector<8x32xf32>
    %52 = arith.addf %48, %51 : vector<8x32xf32>
    %53 = vector.broadcast %2 : vector<1x32xf32> to vector<8x32xf32>
    %54 = arith.addf %52, %53 : vector<8x32xf32>
    %cst_6 = arith.constant 0.000000e+00 : f32
    %55 = vector.broadcast %cst_6 : f32 to vector<8x32xf32>
    %56 = arith.maximumf %54, %55 : vector<8x32xf32>
    %57 = vector.extract_strided_slice %0 {offsets = [0, 8], sizes = [8, 1], strides = [1, 1]} : vector<8x24xf32> to vector<8x1xf32>
    %58 = vector.extract_strided_slice %0 {offsets = [0, 9], sizes = [8, 1], strides = [1, 1]} : vector<8x24xf32> to vector<8x1xf32>
    %59 = vector.broadcast %57 : vector<8x1xf32> to vector<8x32xf32>
    %60 = vector.broadcast %3 : vector<1x32xf32> to vector<8x32xf32>
    %61 = arith.mulf %59, %60 : vector<8x32xf32>
    %62 = vector.broadcast %58 : vector<8x1xf32> to vector<8x32xf32>
    %63 = vector.broadcast %4 : vector<1x32xf32> to vector<8x32xf32>
    %64 = arith.mulf %62, %63 : vector<8x32xf32>
    %65 = arith.addf %61, %64 : vector<8x32xf32>
    %66 = vector.broadcast %2 : vector<1x32xf32> to vector<8x32xf32>
    %67 = arith.addf %65, %66 : vector<8x32xf32>
    %cst_7 = arith.constant 0.000000e+00 : f32
    %68 = vector.broadcast %cst_7 : f32 to vector<8x32xf32>
    %69 = arith.maximumf %67, %68 : vector<8x32xf32>
    %70 = vector.extract_strided_slice %0 {offsets = [0, 10], sizes = [8, 1], strides = [1, 1]} : vector<8x24xf32> to vector<8x1xf32>
    %71 = vector.extract_strided_slice %0 {offsets = [0, 11], sizes = [8, 1], strides = [1, 1]} : vector<8x24xf32> to vector<8x1xf32>
    %72 = vector.broadcast %70 : vector<8x1xf32> to vector<8x32xf32>
    %73 = vector.broadcast %3 : vector<1x32xf32> to vector<8x32xf32>
    %74 = arith.mulf %72, %73 : vector<8x32xf32>
    %75 = vector.broadcast %71 : vector<8x1xf32> to vector<8x32xf32>
    %76 = vector.broadcast %4 : vector<1x32xf32> to vector<8x32xf32>
    %77 = arith.mulf %75, %76 : vector<8x32xf32>
    %78 = arith.addf %74, %77 : vector<8x32xf32>
    %79 = vector.broadcast %2 : vector<1x32xf32> to vector<8x32xf32>
    %80 = arith.addf %78, %79 : vector<8x32xf32>
    %cst_8 = arith.constant 0.000000e+00 : f32
    %81 = vector.broadcast %cst_8 : f32 to vector<8x32xf32>
    %82 = arith.maximumf %80, %81 : vector<8x32xf32>
    %83 = vector.extract_strided_slice %0 {offsets = [0, 12], sizes = [8, 1], strides = [1, 1]} : vector<8x24xf32> to vector<8x1xf32>
    %84 = vector.extract_strided_slice %0 {offsets = [0, 13], sizes = [8, 1], strides = [1, 1]} : vector<8x24xf32> to vector<8x1xf32>
    %85 = vector.broadcast %83 : vector<8x1xf32> to vector<8x32xf32>
    %86 = vector.broadcast %3 : vector<1x32xf32> to vector<8x32xf32>
    %87 = arith.mulf %85, %86 : vector<8x32xf32>
    %88 = vector.broadcast %84 : vector<8x1xf32> to vector<8x32xf32>
    %89 = vector.broadcast %4 : vector<1x32xf32> to vector<8x32xf32>
    %90 = arith.mulf %88, %89 : vector<8x32xf32>
    %91 = arith.addf %87, %90 : vector<8x32xf32>
    %92 = vector.broadcast %2 : vector<1x32xf32> to vector<8x32xf32>
    %93 = arith.addf %91, %92 : vector<8x32xf32>
    %cst_9 = arith.constant 0.000000e+00 : f32
    %94 = vector.broadcast %cst_9 : f32 to vector<8x32xf32>
    %95 = arith.maximumf %93, %94 : vector<8x32xf32>
    %96 = vector.extract_strided_slice %0 {offsets = [0, 14], sizes = [8, 1], strides = [1, 1]} : vector<8x24xf32> to vector<8x1xf32>
    %97 = vector.extract_strided_slice %0 {offsets = [0, 15], sizes = [8, 1], strides = [1, 1]} : vector<8x24xf32> to vector<8x1xf32>
    %98 = vector.broadcast %96 : vector<8x1xf32> to vector<8x32xf32>
    %99 = vector.broadcast %3 : vector<1x32xf32> to vector<8x32xf32>
    %100 = arith.mulf %98, %99 : vector<8x32xf32>
    %101 = vector.broadcast %97 : vector<8x1xf32> to vector<8x32xf32>
    %102 = vector.broadcast %4 : vector<1x32xf32> to vector<8x32xf32>
    %103 = arith.mulf %101, %102 : vector<8x32xf32>
    %104 = arith.addf %100, %103 : vector<8x32xf32>
    %105 = vector.broadcast %2 : vector<1x32xf32> to vector<8x32xf32>
    %106 = arith.addf %104, %105 : vector<8x32xf32>
    %cst_10 = arith.constant 0.000000e+00 : f32
    %107 = vector.broadcast %cst_10 : f32 to vector<8x32xf32>
    %108 = arith.maximumf %106, %107 : vector<8x32xf32>
    %109 = tpu.concatenate %17, %30, %43, %56, %69, %82, %95, %108 in 0 : vector<8x32xf32>, vector<8x32xf32>, vector<8x32xf32>, vector<8x32xf32>, vector<8x32xf32>, vector<8x32xf32>, vector<8x32xf32>, vector<8x32xf32> -> vector<64x32xf32>
    %cst_11 = arith.constant dense<0.000000e+00> : vector<64x64xf32>
    %110 = tpu.matmul %109, %109, %cst_11 {dimension_numbers = #tpu.dot_dimension_numbers<[1], [1], [0], [0], [0, 0, 1, 0], [], []>} : vector<64x32xf32>, vector<64x32xf32>, vector<64x64xf32> -> vector<64x64xf32>
    %cst_12 = arith.constant 0.176776692 : f32
    %111 = vector.broadcast %cst_12 : f32 to vector<64x64xf32>
    %112 = arith.mulf %110, %111 : vector<64x64xf32>
    %c320 = arith.constant 320 : index
    %c0_13 = arith.constant 0 : index
    %113 = vector.load %arg0[%c320, %c0_13] : memref<392x128xf32, #tpu.memory_space<vmem>>, vector<64x64xf32>
    %114 = arith.addf %112, %113 : vector<64x64xf32>
    %cst_14 = arith.constant dense<0xFF800000> : vector<64xf32>
    %115 = vector.multi_reduction <maximumf>, %114, %cst_14 [1] : vector<64x64xf32> to vector<64xf32>
    %116 = vector.shape_cast %115 : vector<64xf32> to vector<64x1xf32>
    %117 = vector.broadcast %116 : vector<64x1xf32> to vector<64x64xf32>
    %118 = arith.subf %114, %117 : vector<64x64xf32>
    %119 = math.exp %118 : vector<64x64xf32>
    %cst_15 = arith.constant dense<0.000000e+00> : vector<64xf32>
    %120 = vector.multi_reduction <add>, %119, %cst_15 [1] : vector<64x64xf32> to vector<64xf32>
    %121 = vector.shape_cast %120 : vector<64xf32> to vector<64x1xf32>
    %122 = tpu.reciprocal %121 {approx = true} : vector<64x1xf32> -> vector<64x1xf32>
    %123 = vector.broadcast %122 : vector<64x1xf32> to vector<64x64xf32>
    %124 = arith.mulf %119, %123 : vector<64x64xf32>
    %cst_16 = arith.constant dense<0.000000e+00> : vector<64x32xf32>
    %125 = tpu.matmul %124, %109, %cst_16 {dimension_numbers = #tpu.dot_dimension_numbers<[1], [0], [0], [1], [0, 0, 1, 1], [], []>} : vector<64x64xf32>, vector<64x32xf32>, vector<64x32xf32> -> vector<64x32xf32>
    %126 = vector.shape_cast %125 : vector<64x32xf32> to vector<8x8x32xf32>
    %cst_17 = arith.constant dense<0.000000e+00> : vector<8x32xf32>
    %127 = vector.multi_reduction <add>, %126, %cst_17 [0] : vector<8x8x32xf32> to vector<8x32xf32>
    %cst_18 = arith.constant 8.000000e+00 : f32
    %128 = vector.broadcast %cst_18 : f32 to vector<8x32xf32>
    %129 = arith.divf %127, %128 : vector<8x32xf32>
    %c8 = arith.constant 8 : index
    %c0_19 = arith.constant 0 : index
    %130 = vector.load %arg0[%c8, %c0_19] : memref<392x128xf32, #tpu.memory_space<vmem>>, vector<32x32xf32>
    %cst_20 = arith.constant dense<0.000000e+00> : vector<8x32xf32>
    %131 = tpu.matmul %129, %130, %cst_20 {dimension_numbers = #tpu.dot_dimension_numbers<[1], [0], [0], [1], [0, 0, 1, 1], [], []>} : vector<8x32xf32>, vector<32x32xf32>, vector<8x32xf32> -> vector<8x32xf32>
    %c256 = arith.constant 256 : index
    %c0_21 = arith.constant 0 : index
    %132 = vector.load %arg0[%c256, %c0_21] : memref<392x128xf32, #tpu.memory_space<vmem>>, vector<1x32xf32>
    %133 = vector.broadcast %132 : vector<1x32xf32> to vector<8x32xf32>
    %134 = arith.addf %131, %133 : vector<8x32xf32>
    %c40 = arith.constant 40 : index
    %c0_22 = arith.constant 0 : index
    %135 = vector.load %arg0[%c40, %c0_22] : memref<392x128xf32, #tpu.memory_space<vmem>>, vector<24x32xf32>
    %cst_23 = arith.constant dense<0.000000e+00> : vector<8x32xf32>
    %136 = tpu.matmul %0, %135, %cst_23 {dimension_numbers = #tpu.dot_dimension_numbers<[1], [0], [0], [1], [0, 0, 1, 1], [], []>} : vector<8x24xf32>, vector<24x32xf32>, vector<8x32xf32> -> vector<8x32xf32>
    %c264 = arith.constant 264 : index
    %c0_24 = arith.constant 0 : index
    %137 = vector.load %arg0[%c264, %c0_24] : memref<392x128xf32, #tpu.memory_space<vmem>>, vector<1x32xf32>
    %138 = vector.broadcast %137 : vector<1x32xf32> to vector<8x32xf32>
    %139 = arith.addf %136, %138 : vector<8x32xf32>
    %cst_25 = arith.constant 0.000000e+00 : f32
    %140 = vector.broadcast %cst_25 : f32 to vector<8x32xf32>
    %141 = arith.maximumf %139, %140 : vector<8x32xf32>
    %c64 = arith.constant 64 : index
    %c0_26 = arith.constant 0 : index
    %142 = vector.load %arg0[%c64, %c0_26] : memref<392x128xf32, #tpu.memory_space<vmem>>, vector<32x96xf32>
    %cst_27 = arith.constant dense<0.000000e+00> : vector<8x96xf32>
    %143 = tpu.matmul %134, %142, %cst_27 {dimension_numbers = #tpu.dot_dimension_numbers<[1], [0], [0], [1], [0, 0, 1, 1], [], []>} : vector<8x32xf32>, vector<32x96xf32>, vector<8x96xf32> -> vector<8x96xf32>
    %144 = vector.extract_strided_slice %143 {offsets = [0, 0], sizes = [8, 32], strides = [1, 1]} : vector<8x96xf32> to vector<8x32xf32>
    %c96 = arith.constant 96 : index
    %c0_28 = arith.constant 0 : index
    %145 = vector.load %arg0[%c96, %c0_28] : memref<392x128xf32, #tpu.memory_space<vmem>>, vector<32x32xf32>
    %cst_29 = arith.constant dense<0.000000e+00> : vector<8x32xf32>
    %146 = tpu.matmul %141, %145, %cst_29 {dimension_numbers = #tpu.dot_dimension_numbers<[1], [0], [0], [1], [0, 0, 1, 1], [], []>} : vector<8x32xf32>, vector<32x32xf32>, vector<8x32xf32> -> vector<8x32xf32>
    %147 = arith.addf %144, %146 : vector<8x32xf32>
    %c272 = arith.constant 272 : index
    %c0_30 = arith.constant 0 : index
    %148 = vector.load %arg0[%c272, %c0_30] : memref<392x128xf32, #tpu.memory_space<vmem>>, vector<1x32xf32>
    %149 = vector.broadcast %148 : vector<1x32xf32> to vector<8x32xf32>
    %150 = arith.addf %147, %149 : vector<8x32xf32>
    %cst_31 = arith.constant 0.000000e+00 : f32
    %151 = vector.broadcast %cst_31 : f32 to vector<8x32xf32>
    %152 = arith.maximumf %150, %151 : vector<8x32xf32>
    %c128 = arith.constant 128 : index
    %c0_32 = arith.constant 0 : index
    %153 = vector.load %arg0[%c128, %c0_32] : memref<392x128xf32, #tpu.memory_space<vmem>>, vector<32x32xf32>
    %cst_33 = arith.constant dense<0.000000e+00> : vector<8x32xf32>
    %154 = tpu.matmul %152, %153, %cst_33 {dimension_numbers = #tpu.dot_dimension_numbers<[1], [0], [0], [1], [0, 0, 1, 1], [], []>} : vector<8x32xf32>, vector<32x32xf32>, vector<8x32xf32> -> vector<8x32xf32>
    %c280 = arith.constant 280 : index
    %c0_34 = arith.constant 0 : index
    %155 = vector.load %arg0[%c280, %c0_34] : memref<392x128xf32, #tpu.memory_space<vmem>>, vector<1x32xf32>
    %156 = vector.broadcast %155 : vector<1x32xf32> to vector<8x32xf32>
    %157 = arith.addf %154, %156 : vector<8x32xf32>
    %158 = vector.extract_strided_slice %157 {offsets = [0, 0], sizes = [8, 16], strides = [1, 1]} : vector<8x32xf32> to vector<8x16xf32>
    %159 = vector.extract_strided_slice %157 {offsets = [0, 16], sizes = [8, 16], strides = [1, 1]} : vector<8x32xf32> to vector<8x16xf32>
    %cst_35 = arith.constant 5.000000e-01 : f32
    %160 = vector.broadcast %cst_35 : f32 to vector<8x16xf32>
    %161 = arith.mulf %160, %159 : vector<8x16xf32>
    %162 = math.exp %161 : vector<8x16xf32>
    %cst_36 = arith.constant 1.000000e+00 : f32
    %163 = vector.broadcast %cst_36 : f32 to vector<8x16xf32>
    %164 = arith.addf %163, %159 : vector<8x16xf32>
    %165 = arith.mulf %158, %158 : vector<8x16xf32>
    %166 = arith.subf %164, %165 : vector<8x16xf32>
    %167 = arith.mulf %162, %162 : vector<8x16xf32>
    %168 = arith.subf %166, %167 : vector<8x16xf32>
    %cst_37 = arith.constant dense<0.000000e+00> : vector<8xf32>
    %169 = vector.multi_reduction <add>, %168, %cst_37 [1] : vector<8x16xf32> to vector<8xf32>
    %170 = vector.shape_cast %169 : vector<8xf32> to vector<8x1xf32>
    %cst_38 = arith.constant -5.000000e-01 : f32
    %171 = vector.broadcast %cst_38 : f32 to vector<8x1xf32>
    %172 = arith.mulf %171, %170 : vector<8x1xf32>
    %173 = vector.shape_cast %158 : vector<8x16xf32> to vector<1x8x16xf32>
    %174 = vector.shape_cast %173 : vector<1x8x16xf32> to vector<1x8x16xf32>
    %175 = vector.broadcast %174 : vector<1x8x16xf32> to vector<4x8x16xf32>
    %176 = vector.shape_cast %175 : vector<4x8x16xf32> to vector<32x16xf32>
    %177 = vector.shape_cast %162 : vector<8x16xf32> to vector<1x8x16xf32>
    %178 = vector.shape_cast %177 : vector<1x8x16xf32> to vector<1x8x16xf32>
    %179 = vector.broadcast %178 : vector<1x8x16xf32> to vector<4x8x16xf32>
    %180 = vector.shape_cast %179 : vector<4x8x16xf32> to vector<32x16xf32>
    %c0_39 = arith.constant 0 : index
    %c0_40 = arith.constant 0 : index
    %181 = vector.load %arg2[%c0_39, %c0_40] : memref<32x16xf32, #tpu.memory_space<vmem>>, vector<32x16xf32>
    %182 = arith.mulf %180, %181 : vector<32x16xf32>
    %183 = arith.addf %176, %182 : vector<32x16xf32>
    %c160 = arith.constant 160 : index
    %c0_41 = arith.constant 0 : index
    %184 = vector.load %arg0[%c160, %c0_41] : memref<392x128xf32, #tpu.memory_space<vmem>>, vector<16x64xf32>
    %cst_42 = arith.constant dense<0.000000e+00> : vector<32x64xf32>
    %185 = tpu.matmul %183, %184, %cst_42 {dimension_numbers = #tpu.dot_dimension_numbers<[1], [0], [0], [1], [0, 0, 1, 1], [], []>} : vector<32x16xf32>, vector<16x64xf32>, vector<32x64xf32> -> vector<32x64xf32>
    %186 = vector.extract_strided_slice %143 {offsets = [0, 32], sizes = [8, 32], strides = [1, 1]} : vector<8x96xf32> to vector<8x32xf32>
    %187 = vector.shape_cast %186 : vector<8x32xf32> to vector<1x8x32xf32>
    %188 = vector.shape_cast %187 : vector<1x8x32xf32> to vector<1x8x32xf32>
    %189 = vector.broadcast %188 : vector<1x8x32xf32> to vector<4x8x32xf32>
    %190 = vector.shape_cast %189 : vector<4x8x32xf32> to vector<32x32xf32>
    %191 = vector.extract_strided_slice %185 {offsets = [0, 0], sizes = [32, 32], strides = [1, 1]} : vector<32x64xf32> to vector<32x32xf32>
    %192 = arith.addf %190, %191 : vector<32x32xf32>
    %c288 = arith.constant 288 : index
    %c0_43 = arith.constant 0 : index
    %193 = vector.load %arg0[%c288, %c0_43] : memref<392x128xf32, #tpu.memory_space<vmem>>, vector<1x32xf32>
    %194 = vector.broadcast %193 : vector<1x32xf32> to vector<32x32xf32>
    %195 = arith.addf %192, %194 : vector<32x32xf32>
    %cst_44 = arith.constant 0.000000e+00 : f32
    %196 = vector.broadcast %cst_44 : f32 to vector<32x32xf32>
    %197 = arith.maximumf %195, %196 : vector<32x32xf32>
    %c176 = arith.constant 176 : index
    %c0_45 = arith.constant 0 : index
    %198 = vector.load %arg0[%c176, %c0_45] : memref<392x128xf32, #tpu.memory_space<vmem>>, vector<32x2xf32>
    %cst_46 = arith.constant dense<0.000000e+00> : vector<32x2xf32>
    %199 = tpu.matmul %197, %198, %cst_46 {dimension_numbers = #tpu.dot_dimension_numbers<[1], [0], [0], [1], [0, 0, 1, 1], [], []>} : vector<32x32xf32>, vector<32x2xf32>, vector<32x2xf32> -> vector<32x2xf32>
    %c296 = arith.constant 296 : index
    %c0_47 = arith.constant 0 : index
    %200 = vector.load %arg0[%c296, %c0_47] : memref<392x128xf32, #tpu.memory_space<vmem>>, vector<1x2xf32>
    %201 = vector.broadcast %200 : vector<1x2xf32> to vector<32x2xf32>
    %202 = arith.addf %199, %201 : vector<32x2xf32>
    %c208 = arith.constant 208 : index
    %c0_48 = arith.constant 0 : index
    %203 = vector.load %arg0[%c208, %c0_48] : memref<392x128xf32, #tpu.memory_space<vmem>>, vector<2x32xf32>
    %204 = vector.extract_strided_slice %202 {offsets = [0, 0], sizes = [32, 1], strides = [1, 1]} : vector<32x2xf32> to vector<32x1xf32>
    %205 = vector.extract_strided_slice %203 {offsets = [0, 0], sizes = [1, 32], strides = [1, 1]} : vector<2x32xf32> to vector<1x32xf32>
    %206 = vector.broadcast %204 : vector<32x1xf32> to vector<32x32xf32>
    %207 = vector.broadcast %205 : vector<1x32xf32> to vector<32x32xf32>
    %208 = arith.mulf %206, %207 : vector<32x32xf32>
    %209 = vector.extract_strided_slice %202 {offsets = [0, 1], sizes = [32, 1], strides = [1, 1]} : vector<32x2xf32> to vector<32x1xf32>
    %210 = vector.extract_strided_slice %203 {offsets = [1, 0], sizes = [1, 32], strides = [1, 1]} : vector<2x32xf32> to vector<1x32xf32>
    %211 = vector.broadcast %209 : vector<32x1xf32> to vector<32x32xf32>
    %212 = vector.broadcast %210 : vector<1x32xf32> to vector<32x32xf32>
    %213 = arith.mulf %211, %212 : vector<32x32xf32>
    %214 = arith.addf %208, %213 : vector<32x32xf32>
    %215 = vector.extract_strided_slice %143 {offsets = [0, 64], sizes = [8, 32], strides = [1, 1]} : vector<8x96xf32> to vector<8x32xf32>
    %216 = vector.shape_cast %215 : vector<8x32xf32> to vector<1x8x32xf32>
    %217 = vector.shape_cast %216 : vector<1x8x32xf32> to vector<1x8x32xf32>
    %218 = vector.broadcast %217 : vector<1x8x32xf32> to vector<4x8x32xf32>
    %219 = vector.shape_cast %218 : vector<4x8x32xf32> to vector<32x32xf32>
    %220 = vector.extract_strided_slice %185 {offsets = [0, 32], sizes = [32, 32], strides = [1, 1]} : vector<32x64xf32> to vector<32x32xf32>
    %221 = arith.addf %219, %220 : vector<32x32xf32>
    %222 = arith.addf %221, %214 : vector<32x32xf32>
    %c304 = arith.constant 304 : index
    %c0_49 = arith.constant 0 : index
    %223 = vector.load %arg0[%c304, %c0_49] : memref<392x128xf32, #tpu.memory_space<vmem>>, vector<1x32xf32>
    %224 = vector.broadcast %223 : vector<1x32xf32> to vector<32x32xf32>
    %225 = arith.addf %222, %224 : vector<32x32xf32>
    %cst_50 = arith.constant 0.000000e+00 : f32
    %226 = vector.broadcast %cst_50 : f32 to vector<32x32xf32>
    %227 = arith.maximumf %225, %226 : vector<32x32xf32>
    %c216 = arith.constant 216 : index
    %c0_51 = arith.constant 0 : index
    %228 = vector.load %arg0[%c216, %c0_51] : memref<392x128xf32, #tpu.memory_space<vmem>>, vector<32x8xf32>
    %cst_52 = arith.constant dense<0.000000e+00> : vector<32x8xf32>
    %229 = tpu.matmul %227, %228, %cst_52 {dimension_numbers = #tpu.dot_dimension_numbers<[1], [0], [0], [1], [0, 0, 1, 1], [], []>} : vector<32x32xf32>, vector<32x8xf32>, vector<32x8xf32> -> vector<32x8xf32>
    %c312 = arith.constant 312 : index
    %c0_53 = arith.constant 0 : index
    %230 = vector.load %arg0[%c312, %c0_53] : memref<392x128xf32, #tpu.memory_space<vmem>>, vector<1x8xf32>
    %231 = vector.broadcast %230 : vector<1x8xf32> to vector<32x8xf32>
    %232 = arith.addf %229, %231 : vector<32x8xf32>
    %233 = vector.extract_strided_slice %0 {offsets = [0, 16], sizes = [8, 8], strides = [1, 1]} : vector<8x24xf32> to vector<8x8xf32>
    %234 = vector.extract_strided_slice %233 {offsets = [0, 6], sizes = [8, 2], strides = [1, 1]} : vector<8x8xf32> to vector<8x2xf32>
    %235 = vector.extract_strided_slice %202 {offsets = [0, 0], sizes = [8, 2], strides = [1, 1]} : vector<32x2xf32> to vector<8x2xf32>
    %236 = arith.subf %235, %234 : vector<8x2xf32>
    %237 = vector.extract_strided_slice %232 {offsets = [0, 0], sizes = [8, 8], strides = [1, 1]} : vector<32x8xf32> to vector<8x8xf32>
    %238 = arith.subf %237, %233 : vector<8x8xf32>
    %239 = arith.mulf %236, %236 : vector<8x2xf32>
    %cst_54 = arith.constant dense<0.000000e+00> : vector<8xf32>
    %240 = vector.multi_reduction <add>, %239, %cst_54 [1] : vector<8x2xf32> to vector<8xf32>
    %241 = vector.shape_cast %240 : vector<8xf32> to vector<8x1xf32>
    %242 = arith.mulf %238, %238 : vector<8x8xf32>
    %cst_55 = arith.constant dense<0.000000e+00> : vector<8xf32>
    %243 = vector.multi_reduction <add>, %242, %cst_55 [1] : vector<8x8xf32> to vector<8xf32>
    %244 = vector.shape_cast %243 : vector<8xf32> to vector<8x1xf32>
    %245 = vector.extract_strided_slice %202 {offsets = [8, 0], sizes = [8, 2], strides = [1, 1]} : vector<32x2xf32> to vector<8x2xf32>
    %246 = arith.subf %245, %234 : vector<8x2xf32>
    %247 = vector.extract_strided_slice %232 {offsets = [8, 0], sizes = [8, 8], strides = [1, 1]} : vector<32x8xf32> to vector<8x8xf32>
    %248 = arith.subf %247, %233 : vector<8x8xf32>
    %249 = arith.mulf %246, %246 : vector<8x2xf32>
    %cst_56 = arith.constant dense<0.000000e+00> : vector<8xf32>
    %250 = vector.multi_reduction <add>, %249, %cst_56 [1] : vector<8x2xf32> to vector<8xf32>
    %251 = vector.shape_cast %250 : vector<8xf32> to vector<8x1xf32>
    %252 = arith.mulf %248, %248 : vector<8x8xf32>
    %cst_57 = arith.constant dense<0.000000e+00> : vector<8xf32>
    %253 = vector.multi_reduction <add>, %252, %cst_57 [1] : vector<8x8xf32> to vector<8xf32>
    %254 = vector.shape_cast %253 : vector<8xf32> to vector<8x1xf32>
    %255 = vector.extract_strided_slice %202 {offsets = [16, 0], sizes = [8, 2], strides = [1, 1]} : vector<32x2xf32> to vector<8x2xf32>
    %256 = arith.subf %255, %234 : vector<8x2xf32>
    %257 = vector.extract_strided_slice %232 {offsets = [16, 0], sizes = [8, 8], strides = [1, 1]} : vector<32x8xf32> to vector<8x8xf32>
    %258 = arith.subf %257, %233 : vector<8x8xf32>
    %259 = arith.mulf %256, %256 : vector<8x2xf32>
    %cst_58 = arith.constant dense<0.000000e+00> : vector<8xf32>
    %260 = vector.multi_reduction <add>, %259, %cst_58 [1] : vector<8x2xf32> to vector<8xf32>
    %261 = vector.shape_cast %260 : vector<8xf32> to vector<8x1xf32>
    %262 = arith.mulf %258, %258 : vector<8x8xf32>
    %cst_59 = arith.constant dense<0.000000e+00> : vector<8xf32>
    %263 = vector.multi_reduction <add>, %262, %cst_59 [1] : vector<8x8xf32> to vector<8xf32>
    %264 = vector.shape_cast %263 : vector<8xf32> to vector<8x1xf32>
    %265 = vector.extract_strided_slice %202 {offsets = [24, 0], sizes = [8, 2], strides = [1, 1]} : vector<32x2xf32> to vector<8x2xf32>
    %266 = arith.subf %265, %234 : vector<8x2xf32>
    %267 = vector.extract_strided_slice %232 {offsets = [24, 0], sizes = [8, 8], strides = [1, 1]} : vector<32x8xf32> to vector<8x8xf32>
    %268 = arith.subf %267, %233 : vector<8x8xf32>
    %269 = arith.mulf %266, %266 : vector<8x2xf32>
    %cst_60 = arith.constant dense<0.000000e+00> : vector<8xf32>
    %270 = vector.multi_reduction <add>, %269, %cst_60 [1] : vector<8x2xf32> to vector<8xf32>
    %271 = vector.shape_cast %270 : vector<8xf32> to vector<8x1xf32>
    %272 = arith.mulf %268, %268 : vector<8x8xf32>
    %cst_61 = arith.constant dense<0.000000e+00> : vector<8xf32>
    %273 = vector.multi_reduction <add>, %272, %cst_61 [1] : vector<8x8xf32> to vector<8xf32>
    %274 = vector.shape_cast %273 : vector<8xf32> to vector<8x1xf32>
    %275 = tpu.concatenate %241, %251, %261, %271 in 1 : vector<8x1xf32>, vector<8x1xf32>, vector<8x1xf32>, vector<8x1xf32> -> vector<8x4xf32>
    %276 = tpu.concatenate %244, %254, %264, %274 in 1 : vector<8x1xf32>, vector<8x1xf32>, vector<8x1xf32>, vector<8x1xf32> -> vector<8x4xf32>
    %cst_62 = arith.constant dense<0x7F800000> : vector<8xf32>
    %277 = vector.multi_reduction <minimumf>, %275, %cst_62 [1] : vector<8x4xf32> to vector<8xf32>
    %278 = vector.shape_cast %277 : vector<8xf32> to vector<8x1xf32>
    %279 = tpu.iota {dimensions = array<i32: 1>} : vector<8x4xi32>
    %280 = vector.broadcast %278 : vector<8x1xf32> to vector<8x4xf32>
    %281 = arith.cmpf oeq, %275, %280 : vector<8x4xf32>
    %c2147483647_i32 = arith.constant 2147483647 : i32
    %282 = vector.broadcast %c2147483647_i32 : i32 to vector<8x4xi32>
    %283 = arith.select %281, %279, %282 : vector<8x4xi1>, vector<8x4xi32>
    %cst_63 = arith.constant dense<2147483647> : vector<8xi32>
    %284 = vector.multi_reduction <minsi>, %283, %cst_63 [1] : vector<8x4xi32> to vector<8xi32>
    %285 = vector.shape_cast %284 : vector<8xi32> to vector<8x1xi32>
    %286 = vector.broadcast %285 : vector<8x1xi32> to vector<8x4xi32>
    %287 = arith.cmpi eq, %279, %286 : vector<8x4xi32>
    %288 = arith.extui %287 : vector<8x4xi1> to vector<8x4xi32>
    %289 = arith.sitofp %288 : vector<8x4xi32> to vector<8x4xf32>
    %290 = arith.mulf %275, %289 : vector<8x4xf32>
    %cst_64 = arith.constant dense<0.000000e+00> : vector<8xf32>
    %291 = vector.multi_reduction <add>, %290, %cst_64 [1] : vector<8x4xf32> to vector<8xf32>
    %292 = vector.shape_cast %291 : vector<8xf32> to vector<8x1xf32>
    %293 = arith.mulf %276, %289 : vector<8x4xf32>
    %cst_65 = arith.constant dense<0.000000e+00> : vector<8xf32>
    %294 = vector.multi_reduction <add>, %293, %cst_65 [1] : vector<8x4xf32> to vector<8xf32>
    %295 = vector.shape_cast %294 : vector<8xf32> to vector<8x1xf32>
    %c384 = arith.constant 384 : index
    %c0_66 = arith.constant 0 : index
    %296 = vector.load %arg0[%c384, %c0_66] : memref<392x128xf32, #tpu.memory_space<vmem>>, vector<8x1xf32>
    %297 = tpu.concatenate %292, %295, %172 in 1 : vector<8x1xf32>, vector<8x1xf32>, vector<8x1xf32> -> vector<8x3xf32>
    %298 = vector.broadcast %296 : vector<8x1xf32> to vector<8x3xf32>
    %299 = arith.mulf %297, %298 : vector<8x3xf32>
    %cst_67 = arith.constant dense<0.000000e+00> : vector<3xf32>
    %300 = vector.multi_reduction <add>, %299, %cst_67 [0] : vector<8x3xf32> to vector<3xf32>
    %301 = vector.shape_cast %300 : vector<3xf32> to vector<1x3xf32>
    %c0_68 = arith.constant 0 : index
    %c0_69 = arith.constant 0 : index
    %302 = vector.load %arg3[%c0_68, %c0_69] : memref<40x128xf32, #tpu.memory_space<vmem>>, vector<32x2xf32>
    tpu.vector_store %arg3[%c0_68, %c0_69], %202 {strides = array<i32>} : memref<40x128xf32, #tpu.memory_space<vmem>>, vector<32x2xf32>,
    %c0_70 = arith.constant 0 : index
    %c2 = arith.constant 2 : index
    %303 = vector.load %arg3[%c0_70, %c2] : memref<40x128xf32, #tpu.memory_space<vmem>>, vector<32x8xf32>
    tpu.vector_store %arg3[%c0_70, %c2], %232 {strides = array<i32>} : memref<40x128xf32, #tpu.memory_space<vmem>>, vector<32x8xf32>,
    %c32 = arith.constant 32 : index
    %c0_71 = arith.constant 0 : index
    %304 = vector.load %arg3[%c32, %c0_71] : memref<40x128xf32, #tpu.memory_space<vmem>>, vector<1x3xf32>
    tpu.vector_store %arg3[%c32, %c0_71], %301 {strides = array<i32>} : memref<40x128xf32, #tpu.memory_space<vmem>>, vector<1x3xf32>,
    return
  }
}

</mosaic_0001>

<llo_original>
// kernel: vvtrapd_forward.1
$region0: #{vvtrapd_forward.1}
  #allocation0 [shape = 'u32[]', space=smem, size = 0x4, offset = 0x4, fixed_abs, tag = 'smem constant byte address 0x4 - core index']
  #allocation1 [shape = 'u32[144,128]{1,0:T(1,128)}', space=vmem, size = 0x12000, scoped, tag = 'internal scratch']
  %s0 = inlined_call_operand.hbm [shape: f32[392,128], index: 0, kind: input, shape index: {}]
  %s1 = inlined_call_operand.vmem [shape: f32[8,24], index: 1, kind: input, shape index: {}]
  %s2 = inlined_call_operand.vmem [shape: f32[32,16], index: 2, kind: input, shape index: {}]
  %s3 = inlined_call_operand.vmem [shape: f32[40,128], index: 3, kind: output, shape index: {}]
  %s4 = sld [smem:[#allocation0]]
  $region26: #{vvtrapd_forward.1} parent=0
    _
  %s6 = ssub.s32 1, %s4
  %s7 = scalar_select 0, %s6, %s4
  $region1: #{vvtrapd_forward.1} parent=0
    #allocation2 [shape = 'u8[200704]{0}', space=vmem, size = 0x31000, scoped, tag = 'input window, operand 0, single buffered']
    #allocation3 [shape = 's32[1]{0}', space=sflag, size = 0x4, scoped, tag = 'scoped memory for vvtrapd_forward.1']
    %8 = vsyncpa [#allocation3], 0
    // Predicated region
    $region2: #{vvtrapd_forward.1} parent=1 // pred_check
      _
    $region3: #{vvtrapd_forward.1} parent=1 // pred_check_branch
      %10 = sbr.rel (0) target = $region5
    $region4: #{vvtrapd_forward.1} parent=1 // pred_region
      %s12 = ssub.s32 6272, 6272
      %13 = vsyncadd [#allocation3], %s12
      %s14 = sshll.u32 [#allocation2], 4
      %s15 = int_to_ptr.vmem [resolvable:$true] %s14
      %20 = dma.hbm_to_vmem [thread:$0]  %s0, 6272, %s15, [#allocation3], 128, 128, 8
    $region5: #{vvtrapd_forward.1} parent=1 // pred_fallthru
      _
    // Predicated region
    $region6: #{vvtrapd_forward.1} parent=1 // pred_check
      _
    $region7: #{vvtrapd_forward.1} parent=1 // pred_check_branch
      %22 = sbr.rel (0) target = $region9
    $region8: #{vvtrapd_forward.1} parent=1 // pred_region
      _
    $region9: #{vvtrapd_forward.1} parent=1 // pred_fallthru
      _
    // Predicated region
    $region10: #{vvtrapd_forward.1} parent=1 // pred_check
      _
    $region11: #{vvtrapd_forward.1} parent=1 // pred_check_branch
      %24 = sbr.rel (0) target = $region13
    $region12: #{vvtrapd_forward.1} parent=1 // pred_region
      _
    $region13: #{vvtrapd_forward.1} parent=1 // pred_fallthru
      _
    // Predicated region
    $region14: #{vvtrapd_forward.1} parent=1 // pred_check
      _
    $region15: #{vvtrapd_forward.1} parent=1 // pred_check_branch
      %26 = sbr.rel (0) target = $region17
    $region16: #{vvtrapd_forward.1} parent=1 // pred_region
      %27 = dma.done [#allocation3], 6272
    $region17: #{vvtrapd_forward.1} parent=1 // pred_fallthru
      _
    %v28 = vld [vmem:[%s1] sm:$0xff]
    %v29 = vld [vmem:[#allocation2] sm:$0x3]
    %v30 = vld [vmem:[#allocation2 + $0xf8] sm:$0x1]
    %32 = vset.pattern.permute.xlu0 0
    %33 = vperm.xlu0 %32, %v28
    %v34 = vpop.permute.xlu0 %33
    %v36 = vlaneseq
    %v37 = vshrl.u32 %v36, 7
    %v38 = vsub.s32 0, %v37
    %v39 = vrot.slane %v29, %v38
    %v40 = vmul.f32 %v34, %v39
    %41 = vset.pattern.permute.xlu0 1
    %42 = vperm.xlu0 %41, %v28
    %v43 = vpop.permute.xlu0 %42
    %v45 = vlaneseq
    %v46 = vshrl.u32 %v45, 7
    %v47 = vsub.s32 1, %v46
    %v48 = vrot.slane %v29, %v47
    %v49 = vmul.f32 %v43, %v48
    %v50 = vadd.f32 %v40, %v49
    %v51 = vlaneseq
    %v52 = vshrl.u32 %v51, 7
    %v53 = vsub.s32 0, %v52
    %v54 = vrot.slane %v30, %v53
    %v55 = vadd.f32 %v50, %v54
    %v56 = vmax.f32 %v55, 0.0
    %57 = vset.pattern.permute.xlu0 2
    %58 = vperm.xlu0 %57, %v28
    %v59 = vpop.permute.xlu0 %58
    %v61 = vmul.f32 %v59, %v39
    %62 = vset.pattern.permute.xlu0 3
    %63 = vperm.xlu0 %62, %v28
    %v64 = vpop.permute.xlu0 %63
    %v66 = vmul.f32 %v64, %v48
    %v67 = vadd.f32 %v61, %v66
    %v68 = vadd.f32 %v67, %v54
    %v69 = vmax.f32 %v68, 0.0
    %70 = vset.pattern.permute.xlu0 4
    %71 = vperm.xlu0 %70, %v28
    %v72 = vpop.permute.xlu0 %71
    %v74 = vmul.f32 %v72, %v39
    %75 = vset.pattern.permute.xlu0 5
    %76 = vperm.xlu0 %75, %v28
    %v77 = vpop.permute.xlu0 %76
    %v79 = vmul.f32 %v77, %v48
    %v80 = vadd.f32 %v74, %v79
    %v81 = vadd.f32 %v80, %v54
    %v82 = vmax.f32 %v81, 0.0
    %83 = vset.pattern.permute.xlu0 6
    %84 = vperm.xlu0 %83, %v28
    %v85 = vpop.permute.xlu0 %84
    %v87 = vmul.f32 %v85, %v39
    %88 = vset.pattern.permute.xlu0 7
    %89 = vperm.xlu0 %88, %v28
    %v90 = vpop.permute.xlu0 %89
    %v92 = vmul.f32 %v90, %v48
    %v93 = vadd.f32 %v87, %v92
    %v94 = vadd.f32 %v93, %v54
    %v95 = vmax.f32 %v94, 0.0
    %96 = vset.pattern.permute.xlu0 8
    %97 = vperm.xlu0 %96, %v28
    %v98 = vpop.permute.xlu0 %97
    %v100 = vmul.f32 %v98, %v39
    %101 = vset.pattern.permute.xlu0 9
    %102 = vperm.xlu0 %101, %v28
    %v103 = vpop.permute.xlu0 %102
    %v105 = vmul.f32 %v103, %v48
    %v106 = vadd.f32 %v100, %v105
    %v107 = vadd.f32 %v106, %v54
    %v108 = vmax.f32 %v107, 0.0
    %109 = vset.pattern.permute.xlu0 10
    %110 = vperm.xlu0 %109, %v28
    %v111 = vpop.permute.xlu0 %110
    %v113 = vmul.f32 %v111, %v39
    %114 = vset.pattern.permute.xlu0 11
    %115 = vperm.xlu0 %114, %v28
    %v116 = vpop.permute.xlu0 %115
    %v118 = vmul.f32 %v116, %v48
    %v119 = vadd.f32 %v113, %v118
    %v120 = vadd.f32 %v119, %v54
    %v121 = vmax.f32 %v120, 0.0
    %122 = vset.pattern.permute.xlu0 12
    %123 = vperm.xlu0 %122, %v28
    %v124 = vpop.permute.xlu0 %123
    %v126 = vmul.f32 %v124, %v39
    %127 = vset.pattern.permute.xlu0 13
    %128 = vperm.xlu0 %127, %v28
    %v129 = vpop.permute.xlu0 %128
    %v131 = vmul.f32 %v129, %v48
    %v132 = vadd.f32 %v126, %v131
    %v133 = vadd.f32 %v132, %v54
    %v134 = vmax.f32 %v133, 0.0
    %135 = vset.pattern.permute.xlu0 14
    %136 = vperm.xlu0 %135, %v28
    %v137 = vpop.permute.xlu0 %136
    %v139 = vmul.f32 %v137, %v39
    %140 = vset.pattern.permute.xlu0 15
    %141 = vperm.xlu0 %140, %v28
    %v142 = vpop.permute.xlu0 %141
    %v144 = vmul.f32 %v142, %v48
    %v145 = vadd.f32 %v139, %v144
    %v146 = vadd.f32 %v145, %v54
    %v147 = vmax.f32 %v146, 0.0
    %vm148 = vcmask 261120
    %v150 = vsel %vm148, %v56, 0
    %v153 = vsel %vm148, %v69, 0
    %v156 = vsel %vm148, %v82, 0
    %v159 = vsel %vm148, %v95, 0
    %v162 = vsel %vm148, %v108, 0
    %v165 = vsel %vm148, %v121, 0
    %v168 = vsel %vm148, %v134, 0
    %v171 = vsel %vm148, %v147, 0
    %173 = vmatprep.subr.mxu0 0.0
    %174 = vmatpush1.xpose.msra.mxu0 %v150
    %175 = vmatprep.subr.mxu0 0.0
    %176 = vmatpush1.xpose.msra.mxu0 %v153
    %177 = vmatprep.subr.mxu0 0.0
    %178 = vmatpush1.xpose.msra.mxu0 %v156
    %179 = vmatprep.subr.mxu0 0.0
    %180 = vmatpush1.xpose.msra.mxu0 %v159
    %181 = vmatprep.subr.mxu0 0.0
    %182 = vmatpush1.xpose.msra.mxu0 %v162
    %183 = vmatprep.subr.mxu0 0.0
    %184 = vmatpush1.xpose.msra.mxu0 %v165
    %185 = vmatprep.subr.mxu0 0.0
    %186 = vmatpush1.xpose.msra.mxu0 %v168
    %187 = vmatprep.subr.mxu0 0.0
    %188 = vmatpush1.xpose.msra.mxu0 %v171
    %189 = vmatprep.subr.mxu0 0.0
    %190 = vmatpush1.xpose.msra.mxu0 0.0
    %191 = vmatprep.subr.mxu0 0.0
    %192 = vmatpush1.xpose.msra.mxu0 0.0
    %193 = vmatprep.subr.mxu0 0.0
    %194 = vmatpush1.xpose.msra.mxu0 0.0
    %195 = vmatprep.subr.mxu0 0.0
    %196 = vmatpush1.xpose.msra.mxu0 0.0
    %197 = vmatprep.subr.mxu0 0.0
    %198 = vmatpush1.xpose.msra.mxu0 0.0
    %199 = vmatprep.subr.mxu0 0.0
    %200 = vmatpush1.xpose.msra.mxu0 0.0
    %201 = vmatprep.subr.mxu0 0.0
    %202 = vmatpush1.xpose.msra.mxu0 0.0
    %203 = vmatprep.subr.mxu0 0.0
    %204 = vmatpush1.xpose.msra.mxu0 0.0
    %205 = vmatprep.subr.mxu0 0.0
    %206 = vmatpush1.xpose.msra.mxu0 0.0
    %207 = vmatprep.subr.mxu0 0.0
    %208 = vmatpush1.xpose.msra.mxu0 0.0
    %209 = vmatprep.subr.mxu0 0.0
    %210 = vmatpush1.xpose.msra.mxu0 0.0
    %211 = vmatprep.subr.mxu0 0.0
    %212 = vmatpush1.xpose.msra.mxu0 0.0
    %213 = vmatprep.subr.mxu0 0.0
    %214 = vmatpush1.xpose.msra.mxu0 0.0
    %215 = vmatprep.subr.mxu0 0.0
    %216 = vmatpush1.xpose.msra.mxu0 0.0
    %217 = vmatprep.subr.mxu0 0.0
    %218 = vmatpush1.xpose.msra.mxu0 0.0
    %219 = vmatprep.subr.mxu0 0.0
    %220 = vmatpush1.xpose.msra.mxu0 0.0
    %221 = vmatprep.subr.mxu0 0.0
    %222 = vmatpush1.xpose.msra.mxu0 0.0
    %223 = vmatprep.subr.mxu0 0.0
    %224 = vmatpush1.xpose.msra.mxu0 0.0
    %225 = vmatprep.subr.mxu0 0.0
    %226 = vmatpush1.xpose.msra.mxu0 0.0
    %227 = vmatprep.subr.mxu0 0.0
    %228 = vmatpush1.xpose.msra.mxu0 0.0
    %229 = vmatprep.subr.mxu0 0.0
    %230 = vmatpush1.xpose.msra.mxu0 0.0
    %231 = vmatprep.subr.mxu0 0.0
    %232 = vmatpush1.xpose.msra.mxu0 0.0
    %233 = vmatprep.subr.mxu0 0.0
    %234 = vmatpush1.xpose.msra.mxu0 0.0
    %235 = vmatprep.subr.mxu0 0.0
    %236 = vmatpush1.xpose.msra.mxu0 0.0
    %237 = vmatprep.mubr.f32.mxu0 0.0
    %238 = vmatmul.mubr.f32.gmra.mrb[0].mxu0 %v150
    %v239 = vpop.f32.mrb[0].mxu0
    %v240 = vadd.f32 0.0, %v239
    %v241 = vpop.f32.mrb[0].mxu0
    %242 = vmatprep.mubr.f32.mxu0 0.0
    %243 = vmatmul.mubr.f32.gmra.mrb[0].mxu0 %v153
    %v244 = vpop.f32.mrb[0].mxu0
    %v245 = vadd.f32 0.0, %v244
    %v246 = vpop.f32.mrb[0].mxu0
    %247 = vmatprep.mubr.f32.mxu0 0.0
    %248 = vmatmul.mubr.f32.gmra.mrb[0].mxu0 %v156
    %v249 = vpop.f32.mrb[0].mxu0
    %v250 = vadd.f32 0.0, %v249
    %v251 = vpop.f32.mrb[0].mxu0
    %252 = vmatprep.mubr.f32.mxu0 0.0
    %253 = vmatmul.mubr.f32.gmra.mrb[0].mxu0 %v159
    %v254 = vpop.f32.mrb[0].mxu0
    %v255 = vadd.f32 0.0, %v254
    %v256 = vpop.f32.mrb[0].mxu0
    %257 = vmatprep.mubr.f32.mxu0 0.0
    %258 = vmatmul.mubr.f32.gmra.mrb[0].mxu0 %v162
    %v259 = vpop.f32.mrb[0].mxu0
    %v260 = vadd.f32 0.0, %v259
    %v261 = vpop.f32.mrb[0].mxu0
    %262 = vmatprep.mubr.f32.mxu0 0.0
    %263 = vmatmul.mubr.f32.gmra.mrb[0].mxu0 %v165
    %v264 = vpop.f32.mrb[0].mxu0
    %v265 = vadd.f32 0.0, %v264
    %v266 = vpop.f32.mrb[0].mxu0
    %267 = vmatprep.mubr.f32.mxu0 0.0
    %268 = vmatmul.mubr.f32.gmra.mrb[0].mxu0 %v168
    %v269 = vpop.f32.mrb[0].mxu0
    %v270 = vadd.f32 0.0, %v269
    %v271 = vpop.f32.mrb[0].mxu0
    %272 = vmatprep.mubr.f32.mxu0 0.0
    %273 = vmatmul.mubr.f32.gmra.mrb[0].mxu0 %v171
    %v274 = vpop.f32.mrb[0].mxu0
    %v275 = vadd.f32 0.0, %v274
    %v276 = vpop.f32.mrb[0].mxu0
    %277 = vdwg.mxu0
    %v278 = vmul.f32 %v240, 0.17677669
    %v279 = vmul.f32 %v245, 0.17677669
    %v280 = vmul.f32 %v250, 0.17677669
    %v281 = vmul.f32 %v255, 0.17677669
    %v282 = vmul.f32 %v260, 0.17677669
    %v283 = vmul.f32 %v265, 0.17677669
    %v284 = vmul.f32 %v270, 0.17677669
    %v285 = vmul.f32 %v275, 0.17677669
    %v286 = vld [vmem:[#allocation2 + $0x140] sm:$0xff]
    %v287 = vld [vmem:[#allocation2 + $0x148] sm:$0xff]
    %v288 = vld [vmem:[#allocation2 + $0x150] sm:$0xff]
    %v289 = vld [vmem:[#allocation2 + $0x158] sm:$0xff]
    %v290 = vld [vmem:[#allocation2 + $0x160] sm:$0xff]
    %v291 = vld [vmem:[#allocation2 + $0x168] sm:$0xff]
    %v292 = vld [vmem:[#allocation2 + $0x170] sm:$0xff]
    %v293 = vld [vmem:[#allocation2 + $0x178] sm:$0xff]
    %v294 = vadd.f32 %v278, %v286
    %v295 = vadd.f32 %v279, %v287
    %v296 = vadd.f32 %v280, %v288
    %v297 = vadd.f32 %v281, %v289
    %v298 = vadd.f32 %v282, %v290
    %v299 = vadd.f32 %v283, %v291
    %v300 = vadd.f32 %v284, %v292
    %v301 = vadd.f32 %v285, %v293
    %vm302 = vcmask 523264
    %v303 = vsel %vm302, %v294, -inf
    %304 = vmax.xlane.f32.xlu0 %v303
    %v305 = vpop.xlane.xlu0 %304
    %v306 = vsel %vm302, %v295, -inf
    %307 = vmax.xlane.f32.xlu0 %v306
    %v308 = vpop.xlane.xlu0 %307
    %v309 = vsel %vm302, %v296, -inf
    %310 = vmax.xlane.f32.xlu0 %v309
    %v311 = vpop.xlane.xlu0 %310
    %v312 = vsel %vm302, %v297, -inf
    %313 = vmax.xlane.f32.xlu0 %v312
    %v314 = vpop.xlane.xlu0 %313
    %v315 = vsel %vm302, %v298, -inf
    %316 = vmax.xlane.f32.xlu0 %v315
    %v317 = vpop.xlane.xlu0 %316
    %v318 = vsel %vm302, %v299, -inf
    %319 = vmax.xlane.f32.xlu0 %v318
    %v320 = vpop.xlane.xlu0 %319
    %v321 = vsel %vm302, %v300, -inf
    %322 = vmax.xlane.f32.xlu0 %v321
    %v323 = vpop.xlane.xlu0 %322
    %v324 = vsel %vm302, %v301, -inf
    %325 = vmax.xlane.f32.xlu0 %v324
    %v326 = vpop.xlane.xlu0 %325
    %v327 = vsub.f32 %v294, %v305
    %v328 = vsub.f32 %v295, %v308
    %v329 = vsub.f32 %v296, %v311
    %v330 = vsub.f32 %v297, %v314
    %v331 = vsub.f32 %v298, %v317
    %v332 = vsub.f32 %v299, %v320
    %v333 = vsub.f32 %v300, %v323
    %v334 = vsub.f32 %v301, %v326
    %v335 = vmul.f32 %v327, 1.442695
    %v336 = vpow.pop %v335
    %v337 = vmul.f32 %v328, 1.442695
    %v338 = vpow.pop %v337
    %v339 = vmul.f32 %v329, 1.442695
    %v340 = vpow.pop %v339
    %v341 = vmul.f32 %v330, 1.442695
    %v342 = vpow.pop %v341
    %v343 = vmul.f32 %v331, 1.442695
    %v344 = vpow.pop %v343
    %v345 = vmul.f32 %v332, 1.442695
    %v346 = vpow.pop %v345
    %v347 = vmul.f32 %v333, 1.442695
    %v348 = vpow.pop %v347
    %v349 = vmul.f32 %v334, 1.442695
    %v350 = vpow.pop %v349
    %v351 = vsel %vm302, %v336, 0.0
    %352 = vadd.xlane.f32.xlu0 %v351
    %v353 = vpop.xlane.xlu0 %352
    %v354 = vsel %vm302, %v338, 0.0
    %355 = vadd.xlane.f32.xlu0 %v354
    %v356 = vpop.xlane.xlu0 %355
    %v357 = vsel %vm302, %v340, 0.0
    %358 = vadd.xlane.f32.xlu0 %v357
    %v359 = vpop.xlane.xlu0 %358
    %v360 = vsel %vm302, %v342, 0.0
    %361 = vadd.xlane.f32.xlu0 %v360
    %v362 = vpop.xlane.xlu0 %361
    %v363 = vsel %vm302, %v344, 0.0
    %364 = vadd.xlane.f32.xlu0 %v363
    %v365 = vpop.xlane.xlu0 %364
    %v366 = vsel %vm302, %v346, 0.0
    %367 = vadd.xlane.f32.xlu0 %v366
    %v368 = vpop.xlane.xlu0 %367
    %v369 = vsel %vm302, %v348, 0.0
    %370 = vadd.xlane.f32.xlu0 %v369
    %v371 = vpop.xlane.xlu0 %370
    %v372 = vsel %vm302, %v350, 0.0
    %373 = vadd.xlane.f32.xlu0 %v372
    %v374 = vpop.xlane.xlu0 %373
    %v375 = vrcp.pop %v353
    %v376 = vrcp.pop %v356
    %v377 = vrcp.pop %v359
    %v378 = vrcp.pop %v362
    %v379 = vrcp.pop %v365
    %v380 = vrcp.pop %v368
    %v381 = vrcp.pop %v371
    %v382 = vrcp.pop %v374
    %v383 = vmul.f32 %v336, %v375
    %v384 = vmul.f32 %v338, %v376
    %v385 = vmul.f32 %v340, %v377
    %v386 = vmul.f32 %v342, %v378
    %v387 = vmul.f32 %v344, %v379
    %v388 = vmul.f32 %v346, %v380
    %v389 = vmul.f32 %v348, %v381
    %v390 = vmul.f32 %v350, %v382
    %v392 = vsel %vm302, %v383, 0
    %v395 = vsel %vm302, %v384, 0
    %v398 = vsel %vm302, %v385, 0
    %v401 = vsel %vm302, %v386, 0
    %v404 = vsel %vm302, %v387, 0
    %v407 = vsel %vm302, %v388, 0
    %v410 = vsel %vm302, %v389, 0
    %v413 = vsel %vm302, %v390, 0
    %415 = vmatprep.subr.mxu0 0.0
    %416 = vmatpush1.msra.mxu0 %v56
    %417 = vmatprep.subr.mxu0 0.0
    %418 = vmatpush1.msra.mxu0 %v69
    %419 = vmatprep.subr.mxu0 0.0
    %420 = vmatpush1.msra.mxu0 %v82
    %421 = vmatprep.subr.mxu0 0.0
    %422 = vmatpush1.msra.mxu0 %v95
    %423 = vmatprep.subr.mxu0 0.0
    %424 = vmatpush1.msra.mxu0 %v108
    %425 = vmatprep.subr.mxu0 0.0
    %426 = vmatpush1.msra.mxu0 %v121
    %427 = vmatprep.subr.mxu0 0.0
    %428 = vmatpush1.msra.mxu0 %v134
    %429 = vmatprep.subr.mxu0 0.0
    %430 = vmatpush1.msra.mxu0 %v147
    %431 = vmatprep.subr.mxu0 0.0
    %432 = vmatpush1.msra.mxu0 0.0
    %433 = vmatprep.subr.mxu0 0.0
    %434 = vmatpush1.msra.mxu0 0.0
    %435 = vmatprep.subr.mxu0 0.0
    %436 = vmatpush1.msra.mxu0 0.0
    %437 = vmatprep.subr.mxu0 0.0
    %438 = vmatpush1.msra.mxu0 0.0
    %439 = vmatprep.subr.mxu0 0.0
    %440 = vmatpush1.msra.mxu0 0.0
    %441 = vmatprep.subr.mxu0 0.0
    %442 = vmatpush1.msra.mxu0 0.0
    %443 = vmatprep.subr.mxu0 0.0
    %444 = vmatpush1.msra.mxu0 0.0
    %445 = vmatprep.subr.mxu0 0.0
    %446 = vmatpush1.msra.mxu0 0.0
    %447 = vmatprep.subr.mxu0 0.0
    %448 = vmatpush1.msra.mxu0 0.0
    %449 = vmatprep.subr.mxu0 0.0
    %450 = vmatpush1.msra.mxu0 0.0
    %451 = vmatprep.subr.mxu0 0.0
    %452 = vmatpush1.msra.mxu0 0.0
    %453 = vmatprep.subr.mxu0 0.0
    %454 = vmatpush1.msra.mxu0 0.0
    %455 = vmatprep.subr.mxu0 0.0
    %456 = vmatpush1.msra.mxu0 0.0
    %457 = vmatprep.subr.mxu0 0.0
    %458 = vmatpush1.msra.mxu0 0.0
    %459 = vmatprep.subr.mxu0 0.0
    %460 = vmatpush1.msra.mxu0 0.0
    %461 = vmatprep.subr.mxu0 0.0
    %462 = vmatpush1.msra.mxu0 0.0
    %463 = vmatprep.subr.mxu0 0.0
    %464 = vmatpush1.msra.mxu0 0.0
    %465 = vmatprep.subr.mxu0 0.0
    %466 = vmatpush1.msra.mxu0 0.0
    %467 = vmatprep.subr.mxu0 0.0
    %468 = vmatpush1.msra.mxu0 0.0
    %469 = vmatprep.subr.mxu0 0.0
    %470 = vmatpush1.msra.mxu0 0.0
    %471 = vmatprep.subr.mxu0 0.0
    %472 = vmatpush1.msra.mxu0 0.0
    %473 = vmatprep.subr.mxu0 0.0
    %474 = vmatpush1.msra.mxu0 0.0
    %475 = vmatprep.subr.mxu0 0.0
    %476 = vmatpush1.msra.mxu0 0.0
    %477 = vmatprep.subr.mxu0 0.0
    %478 = vmatpush1.msra.mxu0 0.0
    %479 = vmatprep.mubr.f32.mxu0 0.0
    %480 = vmatmul.mubr.f32.gmra.mrb[0].mxu0 %v392
    %v481 = vpop.f32.mrb[0].mxu0
    %v482 = vadd.f32 0.0, %v481
    %v483 = vpop.f32.mrb[0].mxu0
    %484 = vmatprep.mubr.f32.mxu0 0.0
    %485 = vmatmul.mubr.f32.gmra.mrb[0].mxu0 %v395
    %v486 = vpop.f32.mrb[0].mxu0
    %v487 = vadd.f32 0.0, %v486
    %v488 = vpop.f32.mrb[0].mxu0
    %489 = vmatprep.mubr.f32.mxu0 0.0
    %490 = vmatmul.mubr.f32.gmra.mrb[0].mxu0 %v398
    %v491 = vpop.f32.mrb[0].mxu0
    %v492 = vadd.f32 0.0, %v491
    %v493 = vpop.f32.mrb[0].mxu0
    %494 = vmatprep.mubr.f32.mxu0 0.0
    %495 = vmatmul.mubr.f32.gmra.mrb[0].mxu0 %v401
    %v496 = vpop.f32.mrb[0].mxu0
    %v497 = vadd.f32 0.0, %v496
    %v498 = vpop.f32.mrb[0].mxu0
    %499 = vmatprep.mubr.f32.mxu0 0.0
    %500 = vmatmul.mubr.f32.gmra.mrb[0].mxu0 %v404
    %v501 = vpop.f32.mrb[0].mxu0
    %v502 = vadd.f32 0.0, %v501
    %v503 = vpop.f32.mrb[0].mxu0
    %504 = vmatprep.mubr.f32.mxu0 0.0
    %505 = vmatmul.mubr.f32.gmra.mrb[0].mxu0 %v407
    %v506 = vpop.f32.mrb[0].mxu0
    %v507 = vadd.f32 0.0, %v506
    %v508 = vpop.f32.mrb[0].mxu0
    %509 = vmatprep.mubr.f32.mxu0 0.0
    %510 = vmatmul.mubr.f32.gmra.mrb[0].mxu0 %v410
    %v511 = vpop.f32.mrb[0].mxu0
    %v512 = vadd.f32 0.0, %v511
    %v513 = vpop.f32.mrb[0].mxu0
    %514 = vmatprep.mubr.f32.mxu0 0.0
    %515 = vmatmul.mubr.f32.gmra.mrb[0].mxu0 %v413
    %v516 = vpop.f32.mrb[0].mxu0
    %v517 = vadd.f32 0.0, %v516
    %v518 = vpop.f32.mrb[0].mxu0
    %519 = vdwg.mxu0
    %v520 = vsel %vm148, %v482, 0.0
    %v521 = vsel %vm148, %v487, 0.0
    %v522 = vadd.f32 %v520, %v521
    %v523 = vsel %vm148, %v492, 0.0
    %v524 = vadd.f32 %v522, %v523
    %v525 = vsel %vm148, %v497, 0.0
    %v526 = vadd.f32 %v524, %v525
    %v527 = vsel %vm148, %v502, 0.0
    %v528 = vadd.f32 %v526, %v527
    %v529 = vsel %vm148, %v507, 0.0
    %v530 = vadd.f32 %v528, %v529
    %v531 = vsel %vm148, %v512, 0.0
    %v532 = vadd.f32 %v530, %v531
    %v533 = vsel %vm148, %v517, 0.0
    %v534 = vadd.f32 %v532, %v533
    %v535 = vrcp.pop 8.0
    %v536 = vmul.f32 %v534, %v535
    %v537 = vld [vmem:[#allocation2 + $0x8] sm:$0xff]
    %v538 = vld [vmem:[#allocation2 + $0x10] sm:$0xff]
    %v539 = vld [vmem:[#allocation2 + $0x18] sm:$0xff]
    %v540 = vld [vmem:[#allocation2 + $0x20] sm:$0xff]
    %v541 = vld [vmem:[#allocation2 + $0x100] sm:$0x1]
    %v542 = vlaneseq
    %v543 = vshrl.u32 %v542, 7
    %v544 = vsub.s32 0, %v543
    %v545 = vrot.slane %v541, %v544
    %v547 = vsel %vm148, %v536, 0
    %549 = vmatprep.subr.mxu0 0.0
    %550 = vmatpush1.msra.mxu0 %v537
    %551 = vmatprep.subr.mxu0 0.0
    %552 = vmatpush1.msra.mxu0 %v538
    %553 = vmatprep.subr.mxu0 0.0
    %554 = vmatpush1.msra.mxu0 %v539
    %555 = vmatprep.subr.mxu0 0.0
    %556 = vmatpush1.msra.mxu0 %v540
    %557 = vmatprep.subr.mxu0 0.0
    %558 = vmatpush1.msra.mxu0 0.0
    %559 = vmatprep.subr.mxu0 0.0
    %560 = vmatpush1.msra.mxu0 0.0
    %561 = vmatprep.subr.mxu0 0.0
    %562 = vmatpush1.msra.mxu0 0.0
    %563 = vmatprep.subr.mxu0 0.0
    %564 = vmatpush1.msra.mxu0 0.0
    %565 = vmatprep.subr.mxu0 0.0
    %566 = vmatpush1.msra.mxu0 0.0
    %567 = vmatprep.subr.mxu0 0.0
    %568 = vmatpush1.msra.mxu0 0.0
    %569 = vmatprep.subr.mxu0 0.0
    %570 = vmatpush1.msra.mxu0 0.0
    %571 = vmatprep.subr.mxu0 0.0
    %572 = vmatpush1.msra.mxu0 0.0
    %573 = vmatprep.subr.mxu0 0.0
    %574 = vmatpush1.msra.mxu0 0.0
    %575 = vmatprep.subr.mxu0 0.0
    %576 = vmatpush1.msra.mxu0 0.0
    %577 = vmatprep.subr.mxu0 0.0
    %578 = vmatpush1.msra.mxu0 0.0
    %579 = vmatprep.subr.mxu0 0.0
    %580 = vmatpush1.msra.mxu0 0.0
    %581 = vmatprep.subr.mxu0 0.0
    %582 = vmatpush1.msra.mxu0 0.0
    %583 = vmatprep.subr.mxu0 0.0
    %584 = vmatpush1.msra.mxu0 0.0
    %585 = vmatprep.subr.mxu0 0.0
    %586 = vmatpush1.msra.mxu0 0.0
    %587 = vmatprep.subr.mxu0 0.0
    %588 = vmatpush1.msra.mxu0 0.0
    %589 = vmatprep.subr.mxu0 0.0
    %590 = vmatpush1.msra.mxu0 0.0
    %591 = vmatprep.subr.mxu0 0.0
    %592 = vmatpush1.msra.mxu0 0.0
    %593 = vmatprep.subr.mxu0 0.0
    %594 = vmatpush1.msra.mxu0 0.0
    %595 = vmatprep.subr.mxu0 0.0
    %596 = vmatpush1.msra.mxu0 0.0
    %597 = vmatprep.subr.mxu0 0.0
    %598 = vmatpush1.msra.mxu0 0.0
    %599 = vmatprep.subr.mxu0 0.0
    %600 = vmatpush1.msra.mxu0 0.0
    %601 = vmatprep.subr.mxu0 0.0
    %602 = vmatpush1.msra.mxu0 0.0
    %603 = vmatprep.subr.mxu0 0.0
    %604 = vmatpush1.msra.mxu0 0.0
    %605 = vmatprep.subr.mxu0 0.0
    %606 = vmatpush1.msra.mxu0 0.0
    %607 = vmatprep.subr.mxu0 0.0
    %608 = vmatpush1.msra.mxu0 0.0
    %609 = vmatprep.subr.mxu0 0.0
    %610 = vmatpush1.msra.mxu0 0.0
    %611 = vmatprep.subr.mxu0 0.0
    %612 = vmatpush1.msra.mxu0 0.0
    %613 = vmatprep.mubr.f32.mxu0 0.0
    %614 = vmatmul.mubr.f32.gmra.mrb[0].mxu0 %v547
    %v615 = vpop.f32.mrb[0].mxu0
    %v616 = vadd.f32 %v545, %v615
    %v617 = vpop.f32.mrb[0].mxu0
    %618 = vdwg.mxu0
    %v619 = vld [vmem:[#allocation2 + $0x28] sm:$0xff]
    %v620 = vld [vmem:[#allocation2 + $0x30] sm:$0xff]
    %v621 = vld [vmem:[#allocation2 + $0x38] sm:$0xff]
    %v622 = vld [vmem:[#allocation2 + $0x108] sm:$0x1]
    %v623 = vlaneseq
    %v624 = vshrl.u32 %v623, 7
    %v625 = vsub.s32 0, %v624
    %v626 = vrot.slane %v622, %v625
    %vm627 = vcmask 195584
    %v628 = vsel %vm627, %v28, 0
    %630 = vmatprep.subr.mxu0 0.0
    %631 = vmatpush1.msra.mxu0 %v619
    %632 = vmatprep.subr.mxu0 0.0
    %633 = vmatpush1.msra.mxu0 %v620
    %634 = vmatprep.subr.mxu0 0.0
    %635 = vmatpush1.msra.mxu0 %v621
    %636 = vmatprep.subr.mxu0 0.0
    %637 = vmatpush1.msra.mxu0 0.0
    %638 = vmatprep.subr.mxu0 0.0
    %639 = vmatpush1.msra.mxu0 0.0
    %640 = vmatprep.subr.mxu0 0.0
    %641 = vmatpush1.msra.mxu0 0.0
    %642 = vmatprep.subr.mxu0 0.0
    %643 = vmatpush1.msra.mxu0 0.0
    %644 = vmatprep.subr.mxu0 0.0
    %645 = vmatpush1.msra.mxu0 0.0
    %646 = vmatprep.subr.mxu0 0.0
    %647 = vmatpush1.msra.mxu0 0.0
    %648 = vmatprep.subr.mxu0 0.0
    %649 = vmatpush1.msra.mxu0 0.0
    %650 = vmatprep.subr.mxu0 0.0
    %651 = vmatpush1.msra.mxu0 0.0
    %652 = vmatprep.subr.mxu0 0.0
    %653 = vmatpush1.msra.mxu0 0.0
    %654 = vmatprep.subr.mxu0 0.0
    %655 = vmatpush1.msra.mxu0 0.0
    %656 = vmatprep.subr.mxu0 0.0
    %657 = vmatpush1.msra.mxu0 0.0
    %658 = vmatprep.subr.mxu0 0.0
    %659 = vmatpush1.msra.mxu0 0.0
    %660 = vmatprep.subr.mxu0 0.0
    %661 = vmatpush1.msra.mxu0 0.0
    %662 = vmatprep.subr.mxu0 0.0
    %663 = vmatpush1.msra.mxu0 0.0
    %664 = vmatprep.subr.mxu0 0.0
    %665 = vmatpush1.msra.mxu0 0.0
    %666 = vmatprep.subr.mxu0 0.0
    %667 = vmatpush1.msra.mxu0 0.0
    %668 = vmatprep.subr.mxu0 0.0
    %669 = vmatpush1.msra.mxu0 0.0
    %670 = vmatprep.subr.mxu0 0.0
    %671 = vmatpush1.msra.mxu0 0.0
    %672 = vmatprep.subr.mxu0 0.0
    %673 = vmatpush1.msra.mxu0 0.0
    %674 = vmatprep.subr.mxu0 0.0
    %675 = vmatpush1.msra.mxu0 0.0
    %676 = vmatprep.subr.mxu0 0.0
    %677 = vmatpush1.msra.mxu0 0.0
    %678 = vmatprep.subr.mxu0 0.0
    %679 = vmatpush1.msra.mxu0 0.0
    %680 = vmatprep.subr.mxu0 0.0
    %681 = vmatpush1.msra.mxu0 0.0
    %682 = vmatprep.subr.mxu0 0.0
    %683 = vmatpush1.msra.mxu0 0.0
    %684 = vmatprep.subr.mxu0 0.0
    %685 = vmatpush1.msra.mxu0 0.0
    %686 = vmatprep.subr.mxu0 0.0
    %687 = vmatpush1.msra.mxu0 0.0
    %688 = vmatprep.subr.mxu0 0.0
    %689 = vmatpush1.msra.mxu0 0.0
    %690 = vmatprep.subr.mxu0 0.0
    %691 = vmatpush1.msra.mxu0 0.0
    %692 = vmatprep.subr.mxu0 0.0
    %693 = vmatpush1.msra.mxu0 0.0
    %694 = vmatprep.mubr.f32.mxu0 0.0
    %695 = vmatmul.mubr.f32.gmra.mrb[0].mxu0 %v628
    %v696 = vpop.f32.mrb[0].mxu0
    %v697 = vadd.f32 %v626, %v696
    %v698 = vpop.f32.mrb[0].mxu0
    %699 = vdwg.mxu0
    %v700 = vmax.f32 %v697, 0.0
    %v701 = vld [vmem:[#allocation2 + $0x40] sm:$0xff]
    %v702 = vld [vmem:[#allocation2 + $0x48] sm:$0xff]
    %v703 = vld [vmem:[#allocation2 + $0x50] sm:$0xff]
    %v704 = vld [vmem:[#allocation2 + $0x58] sm:$0xff]
    %v706 = vsel %vm148, %v616, 0
    %708 = vmatprep.subr.mxu0 0.0
    %709 = vmatpush1.msra.mxu0 %v701
    %710 = vmatprep.subr.mxu0 0.0
    %711 = vmatpush1.msra.mxu0 %v702
    %712 = vmatprep.subr.mxu0 0.0
    %713 = vmatpush1.msra.mxu0 %v703
    %714 = vmatprep.subr.mxu0 0.0
    %715 = vmatpush1.msra.mxu0 %v704
    %716 = vmatprep.subr.mxu0 0.0
    %717 = vmatpush1.msra.mxu0 0.0
    %718 = vmatprep.subr.mxu0 0.0
    %719 = vmatpush1.msra.mxu0 0.0
    %720 = vmatprep.subr.mxu0 0.0
    %721 = vmatpush1.msra.mxu0 0.0
    %722 = vmatprep.subr.mxu0 0.0
    %723 = vmatpush1.msra.mxu0 0.0
    %724 = vmatprep.subr.mxu0 0.0
    %725 = vmatpush1.msra.mxu0 0.0
    %726 = vmatprep.subr.mxu0 0.0
    %727 = vmatpush1.msra.mxu0 0.0
    %728 = vmatprep.subr.mxu0 0.0
    %729 = vmatpush1.msra.mxu0 0.0
    %730 = vmatprep.subr.mxu0 0.0
    %731 = vmatpush1.msra.mxu0 0.0
    %732 = vmatprep.subr.mxu0 0.0
    %733 = vmatpush1.msra.mxu0 0.0
    %734 = vmatprep.subr.mxu0 0.0
    %735 = vmatpush1.msra.mxu0 0.0
    %736 = vmatprep.subr.mxu0 0.0
    %737 = vmatpush1.msra.mxu0 0.0
    %738 = vmatprep.subr.mxu0 0.0
    %739 = vmatpush1.msra.mxu0 0.0
    %740 = vmatprep.subr.mxu0 0.0
    %741 = vmatpush1.msra.mxu0 0.0
    %742 = vmatprep.subr.mxu0 0.0
    %743 = vmatpush1.msra.mxu0 0.0
    %744 = vmatprep.subr.mxu0 0.0
    %745 = vmatpush1.msra.mxu0 0.0
    %746 = vmatprep.subr.mxu0 0.0
    %747 = vmatpush1.msra.mxu0 0.0
    %748 = vmatprep.subr.mxu0 0.0
    %749 = vmatpush1.msra.mxu0 0.0
    %750 = vmatprep.subr.mxu0 0.0
    %751 = vmatpush1.msra.mxu0 0.0
    %752 = vmatprep.subr.mxu0 0.0
    %753 = vmatpush1.msra.mxu0 0.0
    %754 = vmatprep.subr.mxu0 0.0
    %755 = vmatpush1.msra.mxu0 0.0
    %756 = vmatprep.subr.mxu0 0.0
    %757 = vmatpush1.msra.mxu0 0.0
    %758 = vmatprep.subr.mxu0 0.0
    %759 = vmatpush1.msra.mxu0 0.0
    %760 = vmatprep.subr.mxu0 0.0
    %761 = vmatpush1.msra.mxu0 0.0
    %762 = vmatprep.subr.mxu0 0.0
    %763 = vmatpush1.msra.mxu0 0.0
    %764 = vmatprep.subr.mxu0 0.0
    %765 = vmatpush1.msra.mxu0 0.0
    %766 = vmatprep.subr.mxu0 0.0
    %767 = vmatpush1.msra.mxu0 0.0
    %768 = vmatprep.subr.mxu0 0.0
    %769 = vmatpush1.msra.mxu0 0.0
    %770 = vmatprep.subr.mxu0 0.0
    %771 = vmatpush1.msra.mxu0 0.0
    %772 = vmatprep.mubr.f32.mxu0 0.0
    %773 = vmatmul.mubr.f32.gmra.mrb[0].mxu0 %v706
    %v774 = vpop.f32.mrb[0].mxu0
    %v775 = vadd.f32 0.0, %v774
    %v776 = vpop.f32.mrb[0].mxu0
    %777 = vdwg.mxu0
    %v778 = vld [vmem:[#allocation2 + $0x60] sm:$0xff]
    %v779 = vld [vmem:[#allocation2 + $0x68] sm:$0xff]
    %v780 = vld [vmem:[#allocation2 + $0x70] sm:$0xff]
    %v781 = vld [vmem:[#allocation2 + $0x78] sm:$0xff]
    %v783 = vsel %vm148, %v700, 0
    %785 = vmatprep.subr.mxu0 0.0
    %786 = vmatpush1.msra.mxu0 %v778
    %787 = vmatprep.subr.mxu0 0.0
    %788 = vmatpush1.msra.mxu0 %v779
    %789 = vmatprep.subr.mxu0 0.0
    %790 = vmatpush1.msra.mxu0 %v780
    %791 = vmatprep.subr.mxu0 0.0
    %792 = vmatpush1.msra.mxu0 %v781
    %793 = vmatprep.subr.mxu0 0.0
    %794 = vmatpush1.msra.mxu0 0.0
    %795 = vmatprep.subr.mxu0 0.0
    %796 = vmatpush1.msra.mxu0 0.0
    %797 = vmatprep.subr.mxu0 0.0
    %798 = vmatpush1.msra.mxu0 0.0
    %799 = vmatprep.subr.mxu0 0.0
    %800 = vmatpush1.msra.mxu0 0.0
    %801 = vmatprep.subr.mxu0 0.0
    %802 = vmatpush1.msra.mxu0 0.0
    %803 = vmatprep.subr.mxu0 0.0
    %804 = vmatpush1.msra.mxu0 0.0
    %805 = vmatprep.subr.mxu0 0.0
    %806 = vmatpush1.msra.mxu0 0.0
    %807 = vmatprep.subr.mxu0 0.0
    %808 = vmatpush1.msra.mxu0 0.0
    %809 = vmatprep.subr.mxu0 0.0
    %810 = vmatpush1.msra.mxu0 0.0
    %811 = vmatprep.subr.mxu0 0.0
    %812 = vmatpush1.msra.mxu0 0.0
    %813 = vmatprep.subr.mxu0 0.0
    %814 = vmatpush1.msra.mxu0 0.0
    %815 = vmatprep.subr.mxu0 0.0
    %816 = vmatpush1.msra.mxu0 0.0
    %817 = vmatprep.subr.mxu0 0.0
    %818 = vmatpush1.msra.mxu0 0.0
    %819 = vmatprep.subr.mxu0 0.0
    %820 = vmatpush1.msra.mxu0 0.0
    %821 = vmatprep.subr.mxu0 0.0
    %822 = vmatpush1.msra.mxu0 0.0
    %823 = vmatprep.subr.mxu0 0.0
    %824 = vmatpush1.msra.mxu0 0.0
    %825 = vmatprep.subr.mxu0 0.0
    %826 = vmatpush1.msra.mxu0 0.0
    %827 = vmatprep.subr.mxu0 0.0
    %828 = vmatpush1.msra.mxu0 0.0
    %829 = vmatprep.subr.mxu0 0.0
    %830 = vmatpush1.msra.mxu0 0.0
    %831 = vmatprep.subr.mxu0 0.0
    %832 = vmatpush1.msra.mxu0 0.0
    %833 = vmatprep.subr.mxu0 0.0
    %834 = vmatpush1.msra.mxu0 0.0
    %835 = vmatprep.subr.mxu0 0.0
    %836 = vmatpush1.msra.mxu0 0.0
    %837 = vmatprep.subr.mxu0 0.0
    %838 = vmatpush1.msra.mxu0 0.0
    %839 = vmatprep.subr.mxu0 0.0
    %840 = vmatpush1.msra.mxu0 0.0
    %841 = vmatprep.subr.mxu0 0.0
    %842 = vmatpush1.msra.mxu0 0.0
    %843 = vmatprep.subr.mxu0 0.0
    %844 = vmatpush1.msra.mxu0 0.0
    %845 = vmatprep.subr.mxu0 0.0
    %846 = vmatpush1.msra.mxu0 0.0
    %847 = vmatprep.subr.mxu0 0.0
    %848 = vmatpush1.msra.mxu0 0.0
    %849 = vmatprep.mubr.f32.mxu0 0.0
    %850 = vmatmul.mubr.f32.gmra.mrb[0].mxu0 %v783
    %v851 = vpop.f32.mrb[0].mxu0
    %v852 = vadd.f32 0.0, %v851
    %v853 = vpop.f32.mrb[0].mxu0
    %854 = vdwg.mxu0
    %v855 = vadd.f32 %v775, %v852
    %v856 = vld [vmem:[#allocation2 + $0x110] sm:$0x1]
    %v857 = vlaneseq
    %v858 = vshrl.u32 %v857, 7
    %v859 = vsub.s32 0, %v858
    %v860 = vrot.slane %v856, %v859
    %v861 = vadd.f32 %v855, %v860
    %v862 = vmax.f32 %v861, 0.0
    %v863 = vld [vmem:[#allocation2 + $0x80] sm:$0xff]
    %v864 = vld [vmem:[#allocation2 + $0x88] sm:$0xff]
    %v865 = vld [vmem:[#allocation2 + $0x90] sm:$0xff]
    %v866 = vld [vmem:[#allocation2 + $0x98] sm:$0xff]
    %v867 = vld [vmem:[#allocation2 + $0x118] sm:$0x1]
    %v868 = vlaneseq
    %v869 = vshrl.u32 %v868, 7
    %v870 = vsub.s32 0, %v869
    %v871 = vrot.slane %v867, %v870
    %v873 = vsel %vm148, %v862, 0
    %875 = vmatprep.subr.mxu0 0.0
    %876 = vmatpush1.msra.mxu0 %v863
    %877 = vmatprep.subr.mxu0 0.0
    %878 = vmatpush1.msra.mxu0 %v864
    %879 = vmatprep.subr.mxu0 0.0
    %880 = vmatpush1.msra.mxu0 %v865
    %881 = vmatprep.subr.mxu0 0.0
    %882 = vmatpush1.msra.mxu0 %v866
    %883 = vmatprep.subr.mxu0 0.0
    %884 = vmatpush1.msra.mxu0 0.0
    %885 = vmatprep.subr.mxu0 0.0
    %886 = vmatpush1.msra.mxu0 0.0
    %887 = vmatprep.subr.mxu0 0.0
    %888 = vmatpush1.msra.mxu0 0.0
    %889 = vmatprep.subr.mxu0 0.0
    %890 = vmatpush1.msra.mxu0 0.0
    %891 = vmatprep.subr.mxu0 0.0
    %892 = vmatpush1.msra.mxu0 0.0
    %893 = vmatprep.subr.mxu0 0.0
    %894 = vmatpush1.msra.mxu0 0.0
    %895 = vmatprep.subr.mxu0 0.0
    %896 = vmatpush1.msra.mxu0 0.0
    %897 = vmatprep.subr.mxu0 0.0
    %898 = vmatpush1.msra.mxu0 0.0
    %899 = vmatprep.subr.mxu0 0.0
    %900 = vmatpush1.msra.mxu0 0.0
    %901 = vmatprep.subr.mxu0 0.0
    %902 = vmatpush1.msra.mxu0 0.0
    %903 = vmatprep.subr.mxu0 0.0
    %904 = vmatpush1.msra.mxu0 0.0
    %905 = vmatprep.subr.mxu0 0.0
    %906 = vmatpush1.msra.mxu0 0.0
    %907 = vmatprep.subr.mxu0 0.0
    %908 = vmatpush1.msra.mxu0 0.0
    %909 = vmatprep.subr.mxu0 0.0
    %910 = vmatpush1.msra.mxu0 0.0
    %911 = vmatprep.subr.mxu0 0.0
    %912 = vmatpush1.msra.mxu0 0.0
    %913 = vmatprep.subr.mxu0 0.0
    %914 = vmatpush1.msra.mxu0 0.0
    %915 = vmatprep.subr.mxu0 0.0
    %916 = vmatpush1.msra.mxu0 0.0
    %917 = vmatprep.subr.mxu0 0.0
    %918 = vmatpush1.msra.mxu0 0.0
    %919 = vmatprep.subr.mxu0 0.0
    %920 = vmatpush1.msra.mxu0 0.0
    %921 = vmatprep.subr.mxu0 0.0
    %922 = vmatpush1.msra.mxu0 0.0
    %923 = vmatprep.subr.mxu0 0.0
    %924 = vmatpush1.msra.mxu0 0.0
    %925 = vmatprep.subr.mxu0 0.0
    %926 = vmatpush1.msra.mxu0 0.0
    %927 = vmatprep.subr.mxu0 0.0
    %928 = vmatpush1.msra.mxu0 0.0
    %929 = vmatprep.subr.mxu0 0.0
    %930 = vmatpush1.msra.mxu0 0.0
    %931 = vmatprep.subr.mxu0 0.0
    %932 = vmatpush1.msra.mxu0 0.0
    %933 = vmatprep.subr.mxu0 0.0
    %934 = vmatpush1.msra.mxu0 0.0
    %935 = vmatprep.subr.mxu0 0.0
    %936 = vmatpush1.msra.mxu0 0.0
    %937 = vmatprep.subr.mxu0 0.0
    %938 = vmatpush1.msra.mxu0 0.0
    %939 = vmatprep.mubr.f32.mxu0 0.0
    %940 = vmatmul.mubr.f32.gmra.mrb[0].mxu0 %v873
    %v941 = vpop.f32.mrb[0].mxu0
    %v942 = vadd.f32 %v871, %v941
    %v943 = vpop.f32.mrb[0].mxu0
    %944 = vdwg.mxu0
    %v945 = vmul.f32 %v942, 0.5
    %v946 = vmul.f32 %v945, 1.442695
    %v947 = vpow.pop %v946
    %v948 = vadd.f32 %v942, 1.0
    %v949 = vmul.f32 %v942, %v942
    %951 = vrot.lane.b32.xlu0 %v949, 16
    %v952 = vpop.permute.xlu0 %951
    %v954 = vsub.f32 %v948, %v952
    %v955 = vmul.f32 %v947, %v947
    %v956 = vsub.f32 %v954, %v955
    %958 = vrot.lane.b32.xlu0 %v956, 112
    %v959 = vpop.permute.xlu0 %958
    %vm961 = vcmask 130048
    %v962 = vsel %vm961, %v959, 0.0
    %963 = vadd.xlane.f32.xlu0 %v962
    %v964 = vpop.xlane.xlu0 %963
    %v965 = vmul.f32 %v964, -0.5
    %v966 = vld [vmem:[%s2] sm:$0xff]
    %v967 = vld [vmem:[%s2 + $0x8] sm:$0xff]
    %v968 = vld [vmem:[%s2 + $0x10] sm:$0xff]
    %v969 = vld [vmem:[%s2 + $0x18] sm:$0xff]
    %974 = vrot.lane.b32.xlu0 %v966, 16
    %v975 = vpop.permute.xlu0 %974
    %976 = vrot.lane.b32.xlu0 %v967, 16
    %v977 = vpop.permute.xlu0 %976
    %978 = vrot.lane.b32.xlu0 %v968, 16
    %v979 = vpop.permute.xlu0 %978
    %980 = vrot.lane.b32.xlu0 %v969, 16
    %v981 = vpop.permute.xlu0 %980
    %v986 = vmul.f32 %v947, %v975
    %v987 = vmul.f32 %v947, %v977
    %v988 = vmul.f32 %v947, %v979
    %v989 = vmul.f32 %v947, %v981
    %994 = vrot.lane.b32.xlu0 %v986, 112
    %v995 = vpop.permute.xlu0 %994
    %996 = vrot.lane.b32.xlu0 %v987, 112
    %v997 = vpop.permute.xlu0 %996
    %998 = vrot.lane.b32.xlu0 %v988, 112
    %v999 = vpop.permute.xlu0 %998
    %1000 = vrot.lane.b32.xlu0 %v989, 112
    %v1001 = vpop.permute.xlu0 %1000
    %v1006 = vadd.f32 %v942, %v995
    %v1007 = vadd.f32 %v942, %v997
    %v1008 = vadd.f32 %v942, %v999
    %v1009 = vadd.f32 %v942, %v1001
    %v1010 = vld [vmem:[#allocation2 + $0xa0] sm:$0xff]
    %v1011 = vld [vmem:[#allocation2 + $0xa8] sm:$0xff]
    %v1013 = vsel %vm961, %v1006, 0
    %v1016 = vsel %vm961, %v1007, 0
    %v1019 = vsel %vm961, %v1008, 0
    %v1022 = vsel %vm961, %v1009, 0
    %1024 = vmatprep.subr.mxu0 0.0
    %1025 = vmatpush1.msra.mxu0 %v1010
    %1026 = vmatprep.subr.mxu0 0.0
    %1027 = vmatpush1.msra.mxu0 %v1011
    %1028 = vmatprep.subr.mxu0 0.0
    %1029 = vmatpush1.msra.mxu0 0.0
    %1030 = vmatprep.subr.mxu0 0.0
    %1031 = vmatpush1.msra.mxu0 0.0
    %1032 = vmatprep.subr.mxu0 0.0
    %1033 = vmatpush1.msra.mxu0 0.0
    %1034 = vmatprep.subr.mxu0 0.0
    %1035 = vmatpush1.msra.mxu0 0.0
    %1036 = vmatprep.subr.mxu0 0.0
    %1037 = vmatpush1.msra.mxu0 0.0
    %1038 = vmatprep.subr.mxu0 0.0
    %1039 = vmatpush1.msra.mxu0 0.0
    %1040 = vmatprep.subr.mxu0 0.0
    %1041 = vmatpush1.msra.mxu0 0.0
    %1042 = vmatprep.subr.mxu0 0.0
    %1043 = vmatpush1.msra.mxu0 0.0
    %1044 = vmatprep.subr.mxu0 0.0
    %1045 = vmatpush1.msra.mxu0 0.0
    %1046 = vmatprep.subr.mxu0 0.0
    %1047 = vmatpush1.msra.mxu0 0.0
    %1048 = vmatprep.subr.mxu0 0.0
    %1049 = vmatpush1.msra.mxu0 0.0
    %1050 = vmatprep.subr.mxu0 0.0
    %1051 = vmatpush1.msra.mxu0 0.0
    %1052 = vmatprep.subr.mxu0 0.0
    %1053 = vmatpush1.msra.mxu0 0.0
    %1054 = vmatprep.subr.mxu0 0.0
    %1055 = vmatpush1.msra.mxu0 0.0
    %1056 = vmatprep.subr.mxu0 0.0
    %1057 = vmatpush1.msra.mxu0 0.0
    %1058 = vmatprep.subr.mxu0 0.0
    %1059 = vmatpush1.msra.mxu0 0.0
    %1060 = vmatprep.subr.mxu0 0.0
    %1061 = vmatpush1.msra.mxu0 0.0
    %1062 = vmatprep.subr.mxu0 0.0
    %1063 = vmatpush1.msra.mxu0 0.0
    %1064 = vmatprep.subr.mxu0 0.0
    %1065 = vmatpush1.msra.mxu0 0.0
    %1066 = vmatprep.subr.mxu0 0.0
    %1067 = vmatpush1.msra.mxu0 0.0
    %1068 = vmatprep.subr.mxu0 0.0
    %1069 = vmatpush1.msra.mxu0 0.0
    %1070 = vmatprep.subr.mxu0 0.0
    %1071 = vmatpush1.msra.mxu0 0.0
    %1072 = vmatprep.subr.mxu0 0.0
    %1073 = vmatpush1.msra.mxu0 0.0
    %1074 = vmatprep.subr.mxu0 0.0
    %1075 = vmatpush1.msra.mxu0 0.0
    %1076 = vmatprep.subr.mxu0 0.0
    %1077 = vmatpush1.msra.mxu0 0.0
    %1078 = vmatprep.subr.mxu0 0.0
    %1079 = vmatpush1.msra.mxu0 0.0
    %1080 = vmatprep.subr.mxu0 0.0
    %1081 = vmatpush1.msra.mxu0 0.0
    %1082 = vmatprep.subr.mxu0 0.0
    %1083 = vmatpush1.msra.mxu0 0.0
    %1084 = vmatprep.subr.mxu0 0.0
    %1085 = vmatpush1.msra.mxu0 0.0
    %1086 = vmatprep.subr.mxu0 0.0
    %1087 = vmatpush1.msra.mxu0 0.0
    %1088 = vmatprep.mubr.f32.mxu0 0.0
    %1089 = vmatmul.mubr.f32.gmra.mrb[0].mxu0 %v1013
    %v1090 = vpop.f32.mrb[0].mxu0
    %v1091 = vadd.f32 0.0, %v1090
    %v1092 = vpop.f32.mrb[0].mxu0
    %1093 = vmatprep.mubr.f32.mxu0 0.0
    %1094 = vmatmul.mubr.f32.gmra.mrb[0].mxu0 %v1016
    %v1095 = vpop.f32.mrb[0].mxu0
    %v1096 = vadd.f32 0.0, %v1095
    %v1097 = vpop.f32.mrb[0].mxu0
    %1098 = vmatprep.mubr.f32.mxu0 0.0
    %1099 = vmatmul.mubr.f32.gmra.mrb[0].mxu0 %v1019
    %v1100 = vpop.f32.mrb[0].mxu0
    %v1101 = vadd.f32 0.0, %v1100
    %v1102 = vpop.f32.mrb[0].mxu0
    %1103 = vmatprep.mubr.f32.mxu0 0.0
    %1104 = vmatmul.mubr.f32.gmra.mrb[0].mxu0 %v1022
    %v1105 = vpop.f32.mrb[0].mxu0
    %v1106 = vadd.f32 0.0, %v1105
    %v1107 = vpop.f32.mrb[0].mxu0
    %1108 = vdwg.mxu0
    %1113 = vrot.lane.b32.xlu0 %v1091, 32
    %v1114 = vpop.permute.xlu0 %1113
    %1115 = vrot.lane.b32.xlu0 %v1096, 32
    %v1116 = vpop.permute.xlu0 %1115
    %1117 = vrot.lane.b32.xlu0 %v1101, 32
    %v1118 = vpop.permute.xlu0 %1117
    %1119 = vrot.lane.b32.xlu0 %v1106, 32
    %v1120 = vpop.permute.xlu0 %1119
    %v1125 = vadd.f32 %v775, %v1114
    %v1126 = vadd.f32 %v775, %v1116
    %v1127 = vadd.f32 %v775, %v1118
    %v1128 = vadd.f32 %v775, %v1120
    %v1129 = vld [vmem:[#allocation2 + $0x120] sm:$0x1]
    %v1130 = vlaneseq
    %v1131 = vshrl.u32 %v1130, 7
    %v1132 = vsub.s32 0, %v1131
    %v1133 = vrot.slane %v1129, %v1132
    %1135 = vrot.lane.b32.xlu0 %v1133, 32
    %v1136 = vpop.permute.xlu0 %1135
    %v1138 = vadd.f32 %v1125, %v1136
    %v1139 = vadd.f32 %v1126, %v1136
    %v1140 = vadd.f32 %v1127, %v1136
    %v1141 = vadd.f32 %v1128, %v1136
    %v1142 = vmax.f32 %v1138, 0.0
    %v1143 = vmax.f32 %v1139, 0.0
    %v1144 = vmax.f32 %v1140, 0.0
    %v1145 = vmax.f32 %v1141, 0.0
    %v1146 = vld [vmem:[#allocation2 + $0xb0] sm:$0xff]
    %v1147 = vld [vmem:[#allocation2 + $0xb8] sm:$0xff]
    %v1148 = vld [vmem:[#allocation2 + $0xc0] sm:$0xff]
    %v1149 = vld [vmem:[#allocation2 + $0xc8] sm:$0xff]
    %v1150 = vld [vmem:[#allocation2 + $0x128] sm:$0x1]
    %v1151 = vlaneseq
    %v1152 = vshrl.u32 %v1151, 7
    %v1153 = vsub.s32 0, %v1152
    %v1154 = vrot.slane %v1150, %v1153
    %1159 = vrot.lane.b32.xlu0 %v1142, 96
    %v1160 = vpop.permute.xlu0 %1159
    %1161 = vrot.lane.b32.xlu0 %v1143, 96
    %v1162 = vpop.permute.xlu0 %1161
    %1163 = vrot.lane.b32.xlu0 %v1144, 96
    %v1164 = vpop.permute.xlu0 %1163
    %1165 = vrot.lane.b32.xlu0 %v1145, 96
    %v1166 = vpop.permute.xlu0 %1165
    %v1167 = vsel %vm148, %v1160, 0
    %v1169 = vsel %vm148, %v1162, 0
    %v1171 = vsel %vm148, %v1164, 0
    %v1173 = vsel %vm148, %v1166, 0
    %1175 = vmatprep.subr.mxu0 0.0
    %1176 = vmatpush1.msra.mxu0 %v1146
    %1177 = vmatprep.subr.mxu0 0.0
    %1178 = vmatpush1.msra.mxu0 %v1147
    %1179 = vmatprep.subr.mxu0 0.0
    %1180 = vmatpush1.msra.mxu0 %v1148
    %1181 = vmatprep.subr.mxu0 0.0
    %1182 = vmatpush1.msra.mxu0 %v1149
    %1183 = vmatprep.subr.mxu0 0.0
    %1184 = vmatpush1.msra.mxu0 0.0
    %1185 = vmatprep.subr.mxu0 0.0
    %1186 = vmatpush1.msra.mxu0 0.0
    %1187 = vmatprep.subr.mxu0 0.0
    %1188 = vmatpush1.msra.mxu0 0.0
    %1189 = vmatprep.subr.mxu0 0.0
    %1190 = vmatpush1.msra.mxu0 0.0
    %1191 = vmatprep.subr.mxu0 0.0
    %1192 = vmatpush1.msra.mxu0 0.0
    %1193 = vmatprep.subr.mxu0 0.0
    %1194 = vmatpush1.msra.mxu0 0.0
    %1195 = vmatprep.subr.mxu0 0.0
    %1196 = vmatpush1.msra.mxu0 0.0
    %1197 = vmatprep.subr.mxu0 0.0
    %1198 = vmatpush1.msra.mxu0 0.0
    %1199 = vmatprep.subr.mxu0 0.0
    %1200 = vmatpush1.msra.mxu0 0.0
    %1201 = vmatprep.subr.mxu0 0.0
    %1202 = vmatpush1.msra.mxu0 0.0
    %1203 = vmatprep.subr.mxu0 0.0
    %1204 = vmatpush1.msra.mxu0 0.0
    %1205 = vmatprep.subr.mxu0 0.0
    %1206 = vmatpush1.msra.mxu0 0.0
    %1207 = vmatprep.subr.mxu0 0.0
    %1208 = vmatpush1.msra.mxu0 0.0
    %1209 = vmatprep.subr.mxu0 0.0
    %1210 = vmatpush1.msra.mxu0 0.0
    %1211 = vmatprep.subr.mxu0 0.0
    %1212 = vmatpush1.msra.mxu0 0.0
    %1213 = vmatprep.subr.mxu0 0.0
    %1214 = vmatpush1.msra.mxu0 0.0
    %1215 = vmatprep.subr.mxu0 0.0
    %1216 = vmatpush1.msra.mxu0 0.0
    %1217 = vmatprep.subr.mxu0 0.0
    %1218 = vmatpush1.msra.mxu0 0.0
    %1219 = vmatprep.subr.mxu0 0.0
    %1220 = vmatpush1.msra.mxu0 0.0
    %1221 = vmatprep.subr.mxu0 0.0
    %1222 = vmatpush1.msra.mxu0 0.0
    %1223 = vmatprep.subr.mxu0 0.0
    %1224 = vmatpush1.msra.mxu0 0.0
    %1225 = vmatprep.subr.mxu0 0.0
    %1226 = vmatpush1.msra.mxu0 0.0
    %1227 = vmatprep.subr.mxu0 0.0
    %1228 = vmatpush1.msra.mxu0 0.0
    %1229 = vmatprep.subr.mxu0 0.0
    %1230 = vmatpush1.msra.mxu0 0.0
    %1231 = vmatprep.subr.mxu0 0.0
    %1232 = vmatpush1.msra.mxu0 0.0
    %1233 = vmatprep.subr.mxu0 0.0
    %1234 = vmatpush1.msra.mxu0 0.0
    %1235 = vmatprep.subr.mxu0 0.0
    %1236 = vmatpush1.msra.mxu0 0.0
    %1237 = vmatprep.subr.mxu0 0.0
    %1238 = vmatpush1.msra.mxu0 0.0
    %1239 = vmatprep.mubr.f32.mxu0 0.0
    %1240 = vmatmul.mubr.f32.gmra.mrb[0].mxu0 %v1167
    %v1241 = vpop.f32.mrb[0].mxu0
    %v1242 = vadd.f32 %v1154, %v1241
    %v1243 = vpop.f32.mrb[0].mxu0
    %1244 = vmatprep.mubr.f32.mxu0 0.0
    %1245 = vmatmul.mubr.f32.gmra.mrb[0].mxu0 %v1169
    %v1246 = vpop.f32.mrb[0].mxu0
    %v1247 = vadd.f32 %v1154, %v1246
    %v1248 = vpop.f32.mrb[0].mxu0
    %1249 = vmatprep.mubr.f32.mxu0 0.0
    %1250 = vmatmul.mubr.f32.gmra.mrb[0].mxu0 %v1171
    %v1251 = vpop.f32.mrb[0].mxu0
    %v1252 = vadd.f32 %v1154, %v1251
    %v1253 = vpop.f32.mrb[0].mxu0
    %1254 = vmatprep.mubr.f32.mxu0 0.0
    %1255 = vmatmul.mubr.f32.gmra.mrb[0].mxu0 %v1173
    %v1256 = vpop.f32.mrb[0].mxu0
    %v1257 = vadd.f32 %v1154, %v1256
    %v1258 = vpop.f32.mrb[0].mxu0
    %1259 = vdwg.mxu0
    %v1260 = vld [vmem:[#allocation2 + $0xd0] sm:$0x3]
    %1262 = vset.pattern.permute.xlu0 0
    %1263 = vperm.xlu0 %1262, %v1242
    %v1264 = vpop.permute.xlu0 %1263
    %1267 = vset.pattern.permute.xlu0 0
    %1268 = vperm.xlu0 %1267, %v1247
    %v1269 = vpop.permute.xlu0 %1268
    %1272 = vset.pattern.permute.xlu0 0
    %1273 = vperm.xlu0 %1272, %v1252
    %v1274 = vpop.permute.xlu0 %1273
    %1277 = vset.pattern.permute.xlu0 0
    %1278 = vperm.xlu0 %1277, %v1257
    %v1279 = vpop.permute.xlu0 %1278
    %v1281 = vlaneseq
    %v1282 = vshrl.u32 %v1281, 7
    %v1283 = vsub.s32 0, %v1282
    %v1284 = vrot.slane %v1260, %v1283
    %v1285 = vmul.f32 %v1264, %v1284
    %v1286 = vmul.f32 %v1269, %v1284
    %v1287 = vmul.f32 %v1274, %v1284
    %v1288 = vmul.f32 %v1279, %v1284
    %1289 = vset.pattern.permute.xlu0 1
    %1290 = vperm.xlu0 %1289, %v1242
    %v1291 = vpop.permute.xlu0 %1290
    %1293 = vset.pattern.permute.xlu0 1
    %1294 = vperm.xlu0 %1293, %v1247
    %v1295 = vpop.permute.xlu0 %1294
    %1297 = vset.pattern.permute.xlu0 1
    %1298 = vperm.xlu0 %1297, %v1252
    %v1299 = vpop.permute.xlu0 %1298
    %1301 = vset.pattern.permute.xlu0 1
    %1302 = vperm.xlu0 %1301, %v1257
    %v1303 = vpop.permute.xlu0 %1302
    %v1305 = vlaneseq
    %v1306 = vshrl.u32 %v1305, 7
    %v1307 = vsub.s32 1, %v1306
    %v1308 = vrot.slane %v1260, %v1307
    %v1309 = vmul.f32 %v1291, %v1308
    %v1310 = vmul.f32 %v1295, %v1308
    %v1311 = vmul.f32 %v1299, %v1308
    %v1312 = vmul.f32 %v1303, %v1308
    %v1313 = vadd.f32 %v1285, %v1309
    %v1314 = vadd.f32 %v1286, %v1310
    %v1315 = vadd.f32 %v1287, %v1311
    %v1316 = vadd.f32 %v1288, %v1312
    %1321 = vrot.lane.b32.xlu0 %v1313, 64
    %v1322 = vpop.permute.xlu0 %1321
    %1323 = vrot.lane.b32.xlu0 %v1314, 64
    %v1324 = vpop.permute.xlu0 %1323
    %1325 = vrot.lane.b32.xlu0 %v1315, 64
    %v1326 = vpop.permute.xlu0 %1325
    %1327 = vrot.lane.b32.xlu0 %v1316, 64
    %v1328 = vpop.permute.xlu0 %1327
    %v1333 = vadd.f32 %v1125, %v1322
    %v1334 = vadd.f32 %v1126, %v1324
    %v1335 = vadd.f32 %v1127, %v1326
    %v1336 = vadd.f32 %v1128, %v1328
    %v1337 = vld [vmem:[#allocation2 + $0x130] sm:$0x1]
    %v1338 = vlaneseq
    %v1339 = vshrl.u32 %v1338, 7
    %v1340 = vsub.s32 0, %v1339
    %v1341 = vrot.slane %v1337, %v1340
    %1343 = vrot.lane.b32.xlu0 %v1341, 64
    %v1344 = vpop.permute.xlu0 %1343
    %v1346 = vadd.f32 %v1333, %v1344
    %v1347 = vadd.f32 %v1334, %v1344
    %v1348 = vadd.f32 %v1335, %v1344
    %v1349 = vadd.f32 %v1336, %v1344
    %v1350 = vmax.f32 %v1346, 0.0
    %v1351 = vmax.f32 %v1347, 0.0
    %v1352 = vmax.f32 %v1348, 0.0
    %v1353 = vmax.f32 %v1349, 0.0
    %v1354 = vld [vmem:[#allocation2 + $0xd8] sm:$0xff]
    %v1355 = vld [vmem:[#allocation2 + $0xe0] sm:$0xff]
    %v1356 = vld [vmem:[#allocation2 + $0xe8] sm:$0xff]
    %v1357 = vld [vmem:[#allocation2 + $0xf0] sm:$0xff]
    %v1358 = vld [vmem:[#allocation2 + $0x138] sm:$0x1]
    %v1359 = vlaneseq
    %v1360 = vshrl.u32 %v1359, 7
    %v1361 = vsub.s32 0, %v1360
    %v1362 = vrot.slane %v1358, %v1361
    %1367 = vrot.lane.b32.xlu0 %v1350, 64
    %v1368 = vpop.permute.xlu0 %1367
    %1369 = vrot.lane.b32.xlu0 %v1351, 64
    %v1370 = vpop.permute.xlu0 %1369
    %1371 = vrot.lane.b32.xlu0 %v1352, 64
    %v1372 = vpop.permute.xlu0 %1371
    %1373 = vrot.lane.b32.xlu0 %v1353, 64
    %v1374 = vpop.permute.xlu0 %1373
    %v1375 = vsel %vm148, %v1368, 0
    %v1377 = vsel %vm148, %v1370, 0
    %v1379 = vsel %vm148, %v1372, 0
    %v1381 = vsel %vm148, %v1374, 0
    %1383 = vmatprep.subr.mxu0 0.0
    %1384 = vmatpush1.msra.mxu0 %v1354
    %1385 = vmatprep.subr.mxu0 0.0
    %1386 = vmatpush1.msra.mxu0 %v1355
    %1387 = vmatprep.subr.mxu0 0.0
    %1388 = vmatpush1.msra.mxu0 %v1356
    %1389 = vmatprep.subr.mxu0 0.0
    %1390 = vmatpush1.msra.mxu0 %v1357
    %1391 = vmatprep.subr.mxu0 0.0
    %1392 = vmatpush1.msra.mxu0 0.0
    %1393 = vmatprep.subr.mxu0 0.0
    %1394 = vmatpush1.msra.mxu0 0.0
    %1395 = vmatprep.subr.mxu0 0.0
    %1396 = vmatpush1.msra.mxu0 0.0
    %1397 = vmatprep.subr.mxu0 0.0
    %1398 = vmatpush1.msra.mxu0 0.0
    %1399 = vmatprep.subr.mxu0 0.0
    %1400 = vmatpush1.msra.mxu0 0.0
    %1401 = vmatprep.subr.mxu0 0.0
    %1402 = vmatpush1.msra.mxu0 0.0
    %1403 = vmatprep.subr.mxu0 0.0
    %1404 = vmatpush1.msra.mxu0 0.0
    %1405 = vmatprep.subr.mxu0 0.0
    %1406 = vmatpush1.msra.mxu0 0.0
    %1407 = vmatprep.subr.mxu0 0.0
    %1408 = vmatpush1.msra.mxu0 0.0
    %1409 = vmatprep.subr.mxu0 0.0
    %1410 = vmatpush1.msra.mxu0 0.0
    %1411 = vmatprep.subr.mxu0 0.0
    %1412 = vmatpush1.msra.mxu0 0.0
    %1413 = vmatprep.subr.mxu0 0.0
    %1414 = vmatpush1.msra.mxu0 0.0
    %1415 = vmatprep.subr.mxu0 0.0
    %1416 = vmatpush1.msra.mxu0 0.0
    %1417 = vmatprep.subr.mxu0 0.0
    %1418 = vmatpush1.msra.mxu0 0.0
    %1419 = vmatprep.subr.mxu0 0.0
    %1420 = vmatpush1.msra.mxu0 0.0
    %1421 = vmatprep.subr.mxu0 0.0
    %1422 = vmatpush1.msra.mxu0 0.0
    %1423 = vmatprep.subr.mxu0 0.0
    %1424 = vmatpush1.msra.mxu0 0.0
    %1425 = vmatprep.subr.mxu0 0.0
    %1426 = vmatpush1.msra.mxu0 0.0
    %1427 = vmatprep.subr.mxu0 0.0
    %1428 = vmatpush1.msra.mxu0 0.0
    %1429 = vmatprep.subr.mxu0 0.0
    %1430 = vmatpush1.msra.mxu0 0.0
    %1431 = vmatprep.subr.mxu0 0.0
    %1432 = vmatpush1.msra.mxu0 0.0
    %1433 = vmatprep.subr.mxu0 0.0
    %1434 = vmatpush1.msra.mxu0 0.0
    %1435 = vmatprep.subr.mxu0 0.0
    %1436 = vmatpush1.msra.mxu0 0.0
    %1437 = vmatprep.subr.mxu0 0.0
    %1438 = vmatpush1.msra.mxu0 0.0
    %1439 = vmatprep.subr.mxu0 0.0
    %1440 = vmatpush1.msra.mxu0 0.0
    %1441 = vmatprep.subr.mxu0 0.0
    %1442 = vmatpush1.msra.mxu0 0.0
    %1443 = vmatprep.subr.mxu0 0.0
    %1444 = vmatpush1.msra.mxu0 0.0
    %1445 = vmatprep.subr.mxu0 0.0
    %1446 = vmatpush1.msra.mxu0 0.0
    %1447 = vmatprep.mubr.f32.mxu0 0.0
    %1448 = vmatmul.mubr.f32.gmra.mrb[0].mxu0 %v1375
    %v1449 = vpop.f32.mrb[0].mxu0
    %v1450 = vadd.f32 %v1362, %v1449
    %v1451 = vpop.f32.mrb[0].mxu0
    %1452 = vmatprep.mubr.f32.mxu0 0.0
    %1453 = vmatmul.mubr.f32.gmra.mrb[0].mxu0 %v1377
    %v1454 = vpop.f32.mrb[0].mxu0
    %v1455 = vadd.f32 %v1362, %v1454
    %v1456 = vpop.f32.mrb[0].mxu0
    %1457 = vmatprep.mubr.f32.mxu0 0.0
    %1458 = vmatmul.mubr.f32.gmra.mrb[0].mxu0 %v1379
    %v1459 = vpop.f32.mrb[0].mxu0
    %v1460 = vadd.f32 %v1362, %v1459
    %v1461 = vpop.f32.mrb[0].mxu0
    %1462 = vmatprep.mubr.f32.mxu0 0.0
    %1463 = vmatmul.mubr.f32.gmra.mrb[0].mxu0 %v1381
    %v1464 = vpop.f32.mrb[0].mxu0
    %v1465 = vadd.f32 %v1362, %v1464
    %v1466 = vpop.f32.mrb[0].mxu0
    %1467 = vdwg.mxu0
    %1468 = vrot.lane.b32.xlu0 %v28, 106
    %v1469 = vpop.permute.xlu0 %1468
    %v1471 = vsub.f32 %v1242, %v1469
    %1472 = vrot.lane.b32.xlu0 %v28, 112
    %v1473 = vpop.permute.xlu0 %1472
    %v1475 = vsub.f32 %v1450, %v1473
    %v1476 = vmul.f32 %v1471, %v1471
    %vm1477 = vcmask 15360
    %v1478 = vsel %vm1477, %v1476, 0.0
    %1479 = vadd.xlane.f32.xlu0 %v1478
    %v1480 = vpop.xlane.xlu0 %1479
    %v1481 = vmul.f32 %v1475, %v1475
    %vm1482 = vcmask 64512
    %v1483 = vsel %vm1482, %v1481, 0.0
    %1484 = vadd.xlane.f32.xlu0 %v1483
    %v1485 = vpop.xlane.xlu0 %1484
    %v1486 = vsub.f32 %v1247, %v1469
    %v1487 = vsub.f32 %v1455, %v1473
    %v1488 = vmul.f32 %v1486, %v1486
    %v1489 = vsel %vm1477, %v1488, 0.0
    %1490 = vadd.xlane.f32.xlu0 %v1489
    %v1491 = vpop.xlane.xlu0 %1490
    %v1492 = vmul.f32 %v1487, %v1487
    %v1493 = vsel %vm1482, %v1492, 0.0
    %1494 = vadd.xlane.f32.xlu0 %v1493
    %v1495 = vpop.xlane.xlu0 %1494
    %v1496 = vsub.f32 %v1252, %v1469
    %v1497 = vsub.f32 %v1460, %v1473
    %v1498 = vmul.f32 %v1496, %v1496
    %v1499 = vsel %vm1477, %v1498, 0.0
    %1500 = vadd.xlane.f32.xlu0 %v1499
    %v1501 = vpop.xlane.xlu0 %1500
    %v1502 = vmul.f32 %v1497, %v1497
    %v1503 = vsel %vm1482, %v1502, 0.0
    %1504 = vadd.xlane.f32.xlu0 %v1503
    %v1505 = vpop.xlane.xlu0 %1504
    %v1506 = vsub.f32 %v1257, %v1469
    %v1507 = vsub.f32 %v1465, %v1473
    %v1508 = vmul.f32 %v1506, %v1506
    %v1509 = vsel %vm1477, %v1508, 0.0
    %1510 = vadd.xlane.f32.xlu0 %v1509
    %v1511 = vpop.xlane.xlu0 %1510
    %v1512 = vmul.f32 %v1507, %v1507
    %v1513 = vsel %vm1482, %v1512, 0.0
    %1514 = vadd.xlane.f32.xlu0 %v1513
    %v1515 = vpop.xlane.xlu0 %1514
    %vm1516 = vcmask 7168
    %v1517 = vsel %vm1516, %v1480, %v1491
    %v1518 = vsel %vm1477, %v1517, %v1501
    %vm1519 = vcmask 23552
    %v1520 = vsel %vm1519, %v1518, %v1511
    %v1521 = vsel %vm1516, %v1485, %v1495
    %v1522 = vsel %vm1477, %v1521, %v1505
    %v1523 = vsel %vm1519, %v1522, %v1515
    %vm1524 = vcmask 31744
    %v1525 = vsel %vm1524, %v1520, inf
    %1526 = vmin.xlane.f32.xlu0 %v1525
    %v1527 = vpop.xlane.xlu0 %1526
    %v1528 = vlaneseq
    %v1529 = vand.u32 %v1528, 127
    %vm1530 = vcmp.eq.f32.partialorder %v1520, %v1527
    %v1531 = vsel %vm1530, %v1529, 2147483647
    %v1532 = vsel %vm1524, %v1531, 2147483647
    %v1533 = vand.u32 %v1532, 65535
    %v1534 = vshra.s32 %v1532, 16
    %v1535 = vcvt.s32.f32 %v1533
    %v1536 = vcvt.s32.f32 %v1534
    %1537 = vmin.xlane.f32.xlu0 %v1536
    %v1538 = vpop.xlane.xlu0 %1537
    %vm1539 = vcmp.eq.f32.partialorder %v1536, %v1538
    %v1540 = vsel %vm1539, %v1535, inf
    %1541 = vmin.xlane.f32.xlu0 %v1540
    %v1542 = vpop.xlane.xlu0 %1541
    %v1543 = vcvt.f32.s32 %v1542
    %v1544 = vcvt.f32.s32 %v1538
    %v1545 = vshll.u32 %v1544, 16
    %v1546 = vadd.s32 %v1545, %v1543
    %vm1547 = vcmp.eq.s32.totalorder %v1529, %v1546
    %v1548 = vsel %vm1547, 1, 0
    %v1549 = vcvt.s32.f32 %v1548
    %v1550 = vmul.f32 %v1520, %v1549
    %v1551 = vsel %vm1524, %v1550, 0.0
    %1552 = vadd.xlane.f32.xlu0 %v1551
    %v1553 = vpop.xlane.xlu0 %1552
    %v1554 = vmul.f32 %v1523, %v1549
    %v1555 = vsel %vm1524, %v1554, 0.0
    %1556 = vadd.xlane.f32.xlu0 %v1555
    %v1557 = vpop.xlane.xlu0 %1556
    %v1558 = vld [vmem:[#allocation2 + $0x180] sm:$0xff]
    %v1559 = vsel %vm1516, %v1553, %v1557
    %v1560 = vsel %vm1477, %v1559, %v965
    %1562 = vset.pattern.permute.xlu0 0
    %1563 = vperm.xlu0 %1562, %v1558
    %v1564 = vpop.permute.xlu0 %1563
    %v1566 = vmul.f32 %v1560, %v1564
    %v1567 = vsel %vm1519, %v1566, 0.0
    %v1568 = vrot.slane %v1567, 4
    %v1569 = vadd.f32 %v1567, %v1568
    %v1570 = vrot.slane %v1569, 2
    %v1571 = vadd.f32 %v1569, %v1570
    %v1572 = vrot.slane %v1571, 1
    %v1573 = vadd.f32 %v1571, %v1572
    %1574 = vst.msk [vmem:[%s3] sm:$0xff] %vm1477, %v1242
    %1575 = vst.msk [vmem:[%s3 + $0x8] sm:$0xff] %vm1477, %v1247
    %1576 = vst.msk [vmem:[%s3 + $0x10] sm:$0xff] %vm1477, %v1252
    %1577 = vst.msk [vmem:[%s3 + $0x18] sm:$0xff] %vm1477, %v1257
    %1582 = vrot.lane.b32.xlu0 %v1450, 2
    %v1583 = vpop.permute.xlu0 %1582
    %1584 = vrot.lane.b32.xlu0 %v1455, 2
    %v1585 = vpop.permute.xlu0 %1584
    %1586 = vrot.lane.b32.xlu0 %v1460, 2
    %v1587 = vpop.permute.xlu0 %1586
    %1588 = vrot.lane.b32.xlu0 %v1465, 2
    %v1589 = vpop.permute.xlu0 %1588
    %vm1594 = vcmask 80912
    %1595 = vst.msk [vmem:[%s3] sm:$0xff] %vm1594, %v1583
    %1596 = vst.msk [vmem:[%s3 + $0x8] sm:$0xff] %vm1594, %v1585
    %1597 = vst.msk [vmem:[%s3 + $0x10] sm:$0xff] %vm1594, %v1587
    %1598 = vst.msk [vmem:[%s3 + $0x18] sm:$0xff] %vm1594, %v1589
    %vm1599 = vcmask 16384
    %1600 = vst.msk [vmem:[%s3 + $0x20] sm:$0x1] %vm1599, %v1573
    // Predicated region
    $region18: #{vvtrapd_forward.1} parent=1 // pred_check
      _
    $region19: #{vvtrapd_forward.1} parent=1 // pred_check_branch
      %1602 = sbr.rel (0) target = $region21
    $region20: #{vvtrapd_forward.1} parent=1 // pred_region
      _
    $region21: #{vvtrapd_forward.1} parent=1 // pred_fallthru
      _
    // Predicated region
    $region22: #{vvtrapd_forward.1} parent=1 // pred_check
      _
    $region23: #{vvtrapd_forward.1} parent=1 // pred_check_branch
      %1604 = sbr.rel (0) target = $region25
    $region24: #{vvtrapd_forward.1} parent=1 // pred_region
      _
    $region25: #{vvtrapd_forward.1} parent=1 // pred_fallthru
      _
    %1605 = vsyncpa [#allocation3], 1

</llo_original>
